<compile_context>
chip_gen: v6e
topology: v6e:2x2x1
jax: 0.10.0
libtpu: 0.0.40
codegen_flags: <defaults>
</compile_context>

<pallas_src>
import functools

import jax
import jax.numpy as jnp
import numpy as np
from jax.experimental import pallas as pl
from jax.experimental.pallas import tpu as pltpu


# ----------------------------- Pallas kernel --------------------------------

def _cell_update(gates, c, H):
    """LSTM cell update from pre-activation gates (B, 4H), order (i, f, g, o).

    Three full-width transcendentals per step: sigmoid over [i|f], and
    tanh + sigmoid over the upper [g|o] 128-lane vreg; gate halves are sliced
    afterwards so all EUP ops stay vreg-aligned.
    """
    sig_if = jax.nn.sigmoid(gates[:, :2 * H])      # [i | f]
    upper = gates[:, 2 * H:]                       # [g | o]
    tanh_up = jnp.tanh(upper)
    sig_up = jax.nn.sigmoid(upper)
    i_g = sig_if[:, :H]
    f_g = sig_if[:, H:]
    g_g = tanh_up[:, :H]
    o_g = sig_up[:, H:]
    c_new = f_g * c + i_g * g_g
    h_new = o_g * jnp.tanh(c_new)
    return h_new, c_new


def _fused_lstm_kernel(*refs, num_layers, T, B, H):
    """num_layers LSTM layers + FC head, wavefront-scheduled, one kernel."""
    f32, bf16 = jnp.float32, jnp.bfloat16

    x_ref = refs[0]
    layer_refs = refs[1:1 + 3 * num_layers]
    w_fc_ref, b_fc_ref, out_ref, xg0_ref = refs[1 + 3 * num_layers:]

    # Weight tiles resident for the whole kernel (bf16 -> single-pass MXU).
    w_ih = [layer_refs[3 * l][...] for l in range(num_layers)]      # bf16
    w_hh = [layer_refs[3 * l + 1][...] for l in range(num_layers)]  # bf16
    bias = [layer_refs[3 * l + 2][...] for l in range(num_layers)]  # f32

    # Hoisted layer-0 input projection: one (T*B, D) @ (D, 4H) GEMM for every
    # timestep at once, parked in VMEM scratch; the serial part only loads rows.
    xg0_ref[...] = (jnp.dot(x_ref[...], w_ih[0], preferred_element_type=f32)
                    + bias[0])

    zeros = jnp.zeros((B, H), f32)
    h = [zeros] * num_layers
    c = [zeros] * num_layers

    # Wavefront over the (layer, time) grid: wave w runs layer-l step t = w - l.
    # Each layer reads only start-of-wave state (h_prev), so the per-wave
    # matmuls are mutually independent and the MXU can pipeline them.
    for w in range(T + num_layers - 1):
        h_prev = list(h)
        for l in range(num_layers):
            t = w - l
            if not (0 <= t < T):
                continue
            rec = jnp.dot(h_prev[l].astype(bf16), w_hh[l],
                          preferred_element_type=f32)
            if l == 0:
                gates = xg0_ref[t * B:(t + 1) * B, :] + rec
            else:
                gates = (jnp.dot(h_prev[l - 1].astype(bf16), w_ih[l],
                                 preferred_element_type=f32)
                         + bias[l] + rec)
            h[l], c[l] = _cell_update(gates, c[l], H)

    # FC head fused into the same kernel: (B, H) @ (H, 1) + (1, 1).
    out_ref[...] = (jnp.dot(h[num_layers - 1], w_fc_ref[...],
                            preferred_element_type=f32) + b_fc_ref[...])


# ------------------------------ Wrapper --------------------------------------

def lstm_model_forward(x_btd, params):
    """x_btd: (B, T, d_feat), batch_first like the PyTorch module. Returns (B,)."""
    B, T, D = x_btd.shape
    H = params["lstm"][0]["w_hh"].shape[0]
    num_layers = len(params["lstm"])

    # (B, T, D) -> time-major, flattened (T*B, D); bf16 MXU operand.
    x_flat = jnp.transpose(x_btd.astype(jnp.float32), (1, 0, 2)).reshape(T * B, D)
    args = [x_flat.astype(jnp.bfloat16)]
    for layer in params["lstm"]:
        args += [layer["w_ih"].astype(jnp.bfloat16),
                 layer["w_hh"].astype(jnp.bfloat16),
                 layer["b"]]
    args += [params["fc_w"], params["fc_b"]]

    kernel = functools.partial(_fused_lstm_kernel,
                               num_layers=num_layers, T=T, B=B, H=H)
    vmem = pltpu.MemorySpace.VMEM
    out = pl.pallas_call(
        kernel,
        out_shape=jax.ShapeDtypeStruct((B, 1), jnp.float32),
        # No grid: everything (weights + activations, well under 1 MB) fits in
        # VMEM; single launch, single tiny store.
        in_specs=[pl.BlockSpec(memory_space=vmem) for _ in args],
        out_specs=pl.BlockSpec(memory_space=vmem),
        scratch_shapes=[pltpu.VMEM((T * B, 4 * H), jnp.float32)],
        compiler_params=pltpu.CompilerParams(vmem_limit_bytes=32 * 1024 * 1024),
    )(*args)
    return jnp.squeeze(out)


# --------------------------- Parameter init ----------------------------------

def init_params(key, d_feat=6, hidden_size=64, num_layers=2):
    """Deterministic init mimicking PyTorch's uniform(-1/sqrt(H), 1/sqrt(H))."""
    bound = 1.0 / np.sqrt(hidden_size)
    layers = []
    for layer_idx in range(num_layers):
        d_in = d_feat if layer_idx == 0 else hidden_size
        key, k1, k2, k3, k4 = jax.random.split(key, 5)
        w_ih = jax.random.uniform(k1, (d_in, 4 * hidden_size), jnp.float32,
                                  -bound, bound)
        w_hh = jax.random.uniform(k2, (hidden_size, 4 * hidden_size), jnp.float32,
                                  -bound, bound)
        b_ih = jax.random.uniform(k3, (4 * hidden_size,), jnp.float32, -bound, bound)
        b_hh = jax.random.uniform(k4, (4 * hidden_size,), jnp.float32, -bound, bound)
        layers.append({"w_ih": w_ih, "w_hh": w_hh,
                       "b": (b_ih + b_hh).reshape(1, 4 * hidden_size)})
    key, k5, k6 = jax.random.split(key, 3)
    fc_w = jax.random.uniform(k5, (hidden_size, 1), jnp.float32, -bound, bound)
    fc_b = jax.random.uniform(k6, (1, 1), jnp.float32, -bound, bound)
    return {"lstm": layers, "fc_w": fc_w, "fc_b": fc_b}


# ----------------------------- Pure-JAX reference ----------------------------

def lstm_model_reference(x_btd, params):
    def layer_scan(x_tbd, w_ih, w_hh, b):
        T, B, _ = x_tbd.shape
        H = w_hh.shape[0]

        def step(carry, x_t):
            h, c = carry
            gates = x_t @ w_ih + h @ w_hh + b[0]
            i = jax.nn.sigmoid(gates[:, 0:H])
            f = jax.nn.sigmoid(gates[:, H:2 * H])
            g = jnp.tanh(gates[:, 2 * H:3 * H])
            o = jax.nn.sigmoid(gates[:, 3 * H:4 * H])
            c = f * c + i * g
            h = o * jnp.tanh(c)
            return (h, c), h

        init = (jnp.zeros((B, H), jnp.float32), jnp.zeros((B, H), jnp.float32))
        _, hs = jax.lax.scan(step, init, x_tbd)
        return hs

    x = jnp.transpose(x_btd.astype(jnp.float32), (1, 0, 2))
    h = x
    for layer in params["lstm"]:
        h = layer_scan(h, layer["w_ih"], layer["w_hh"], layer["b"])
    return jnp.squeeze(h[-1] @ params["fc_w"] + params["fc_b"])


# --------------------------------- Main ---------------------------------------

if __name__ == "__main__":
    D_FEAT, HIDDEN, NUM_LAYERS = 6, 64, 2
    B, T = 2, 8

    key = jax.random.PRNGKey(0)
    key, xkey = jax.random.split(key)
    x = jax.random.normal(xkey, (B, T, D_FEAT), dtype=jnp.float32)

    params = init_params(key, d_feat=D_FEAT, hidden_size=HIDDEN,
                         num_layers=NUM_LAYERS)

    out = lstm_model_forward(x, params)
    out = jax.block_until_ready(out)

    ref = jax.block_until_ready(lstm_model_reference(x, params))
    # Tolerance accounts for bf16 MXU operands vs. the f32 reference
    # (errors accumulate over T=8 recurrent steps and 2 layers).
    np.testing.assert_allclose(np.asarray(out), np.asarray(ref),
                               rtol=2e-2, atol=2e-2)

    print("KERNEL_OK")
</pallas_src>

<mosaic_0001>
module attributes {stable_mosaic.version = 11 : i64} {
  func.func @_fused_lstm_kernel(%arg0: memref<16x6xbf16, #tpu.memory_space<vmem>>, %arg1: memref<6x256xbf16, #tpu.memory_space<vmem>>, %arg2: memref<64x256xbf16, #tpu.memory_space<vmem>>, %arg3: memref<1x256xf32, #tpu.memory_space<vmem>>, %arg4: memref<64x256xbf16, #tpu.memory_space<vmem>>, %arg5: memref<64x256xbf16, #tpu.memory_space<vmem>>, %arg6: memref<1x256xf32, #tpu.memory_space<vmem>>, %arg7: memref<64x1xf32, #tpu.memory_space<vmem>>, %arg8: memref<1x1xf32, #tpu.memory_space<vmem>>, %arg9: memref<2x1xf32, #tpu.memory_space<vmem>>, %arg10: memref<16x256xf32, #tpu.memory_space<vmem>>) attributes {dimension_semantics = [], scalar_prefetch = 0 : i64, scratch_operands = 1 : i64, tpu.core_type = #tpu.core_type<tc>} {
    %c0 = arith.constant 0 : index
    %c0_0 = arith.constant 0 : index
    %0 = vector.load %arg1[%c0, %c0_0] : memref<6x256xbf16, #tpu.memory_space<vmem>>, vector<6x256xbf16>
    %c0_1 = arith.constant 0 : index
    %c0_2 = arith.constant 0 : index
    %1 = vector.load %arg4[%c0_1, %c0_2] : memref<64x256xbf16, #tpu.memory_space<vmem>>, vector<64x256xbf16>
    %c0_3 = arith.constant 0 : index
    %c0_4 = arith.constant 0 : index
    %2 = vector.load %arg2[%c0_3, %c0_4] : memref<64x256xbf16, #tpu.memory_space<vmem>>, vector<64x256xbf16>
    %c0_5 = arith.constant 0 : index
    %c0_6 = arith.constant 0 : index
    %3 = vector.load %arg5[%c0_5, %c0_6] : memref<64x256xbf16, #tpu.memory_space<vmem>>, vector<64x256xbf16>
    %c0_7 = arith.constant 0 : index
    %c0_8 = arith.constant 0 : index
    %4 = vector.load %arg3[%c0_7, %c0_8] : memref<1x256xf32, #tpu.memory_space<vmem>>, vector<1x256xf32>
    %c0_9 = arith.constant 0 : index
    %c0_10 = arith.constant 0 : index
    %5 = vector.load %arg6[%c0_9, %c0_10] : memref<1x256xf32, #tpu.memory_space<vmem>>, vector<1x256xf32>
    %c0_11 = arith.constant 0 : index
    %c0_12 = arith.constant 0 : index
    %6 = vector.load %arg0[%c0_11, %c0_12] : memref<16x6xbf16, #tpu.memory_space<vmem>>, vector<16x6xbf16>
    %cst = arith.constant dense<0.000000e+00> : vector<16x256xf32>
    %7 = tpu.matmul %6, %0, %cst {dimension_numbers = #tpu.dot_dimension_numbers<[1], [0], [0], [1], [0, 0, 1, 1], [], []>} : vector<16x6xbf16>, vector<6x256xbf16>, vector<16x256xf32> -> vector<16x256xf32>
    %8 = vector.broadcast %4 : vector<1x256xf32> to vector<16x256xf32>
    %9 = arith.addf %7, %8 : vector<16x256xf32>
    %c0_13 = arith.constant 0 : index
    %c0_14 = arith.constant 0 : index
    %10 = vector.load %arg10[%c0_13, %c0_14] : memref<16x256xf32, #tpu.memory_space<vmem>>, vector<16x256xf32>
    tpu.vector_store %arg10[%c0_13, %c0_14], %9 {strides = array<i32>} : memref<16x256xf32, #tpu.memory_space<vmem>>, vector<16x256xf32>,
    %cst_15 = arith.constant 0.000000e+00 : f32
    %11 = vector.broadcast %cst_15 : f32 to vector<2x64xf32>
    %12 = arith.truncf %11 : vector<2x64xf32> to vector<2x64xbf16>
    %cst_16 = arith.constant dense<0.000000e+00> : vector<2x256xf32>
    %13 = tpu.matmul %12, %2, %cst_16 {dimension_numbers = #tpu.dot_dimension_numbers<[1], [0], [0], [1], [0, 0, 1, 1], [], []>} : vector<2x64xbf16>, vector<64x256xbf16>, vector<2x256xf32> -> vector<2x256xf32>
    %c0_17 = arith.constant 0 : index
    %c0_18 = arith.constant 0 : index
    %14 = vector.load %arg10[%c0_17, %c0_18] : memref<16x256xf32, #tpu.memory_space<vmem>>, vector<2x256xf32>
    %15 = arith.addf %14, %13 : vector<2x256xf32>
    %16 = vector.extract_strided_slice %15 {offsets = [0, 0], sizes = [2, 128], strides = [1, 1]} : vector<2x256xf32> to vector<2x128xf32>
    %17 = arith.negf %16 : vector<2x128xf32>
    %18 = math.exp %17 : vector<2x128xf32>
    %cst_19 = arith.constant 1.000000e+00 : f32
    %19 = vector.broadcast %cst_19 : f32 to vector<2x128xf32>
    %20 = arith.addf %19, %18 : vector<2x128xf32>
    %21 = arith.divf %19, %20 : vector<2x128xf32>
    %22 = vector.extract_strided_slice %15 {offsets = [0, 128], sizes = [2, 128], strides = [1, 1]} : vector<2x256xf32> to vector<2x128xf32>
    %23 = math.tanh %22 : vector<2x128xf32>
    %24 = arith.negf %22 : vector<2x128xf32>
    %25 = math.exp %24 : vector<2x128xf32>
    %cst_20 = arith.constant 1.000000e+00 : f32
    %26 = vector.broadcast %cst_20 : f32 to vector<2x128xf32>
    %27 = arith.addf %26, %25 : vector<2x128xf32>
    %28 = arith.divf %26, %27 : vector<2x128xf32>
    %29 = vector.extract_strided_slice %21 {offsets = [0, 0], sizes = [2, 64], strides = [1, 1]} : vector<2x128xf32> to vector<2x64xf32>
    %30 = vector.extract_strided_slice %21 {offsets = [0, 64], sizes = [2, 64], strides = [1, 1]} : vector<2x128xf32> to vector<2x64xf32>
    %31 = vector.extract_strided_slice %23 {offsets = [0, 0], sizes = [2, 64], strides = [1, 1]} : vector<2x128xf32> to vector<2x64xf32>
    %32 = vector.extract_strided_slice %28 {offsets = [0, 64], sizes = [2, 64], strides = [1, 1]} : vector<2x128xf32> to vector<2x64xf32>
    %33 = arith.mulf %30, %11 : vector<2x64xf32>
    %34 = arith.mulf %29, %31 : vector<2x64xf32>
    %35 = arith.addf %33, %34 : vector<2x64xf32>
    %36 = math.tanh %35 : vector<2x64xf32>
    %37 = arith.mulf %32, %36 : vector<2x64xf32>
    %38 = arith.truncf %37 : vector<2x64xf32> to vector<2x64xbf16>
    %cst_21 = arith.constant dense<0.000000e+00> : vector<2x256xf32>
    %39 = tpu.matmul %38, %2, %cst_21 {dimension_numbers = #tpu.dot_dimension_numbers<[1], [0], [0], [1], [0, 0, 1, 1], [], []>} : vector<2x64xbf16>, vector<64x256xbf16>, vector<2x256xf32> -> vector<2x256xf32>
    %c2 = arith.constant 2 : index
    %c0_22 = arith.constant 0 : index
    %40 = vector.load %arg10[%c2, %c0_22] : memref<16x256xf32, #tpu.memory_space<vmem>>, vector<2x256xf32>
    %41 = arith.addf %40, %39 : vector<2x256xf32>
    %42 = vector.extract_strided_slice %41 {offsets = [0, 0], sizes = [2, 128], strides = [1, 1]} : vector<2x256xf32> to vector<2x128xf32>
    %43 = arith.negf %42 : vector<2x128xf32>
    %44 = math.exp %43 : vector<2x128xf32>
    %cst_23 = arith.constant 1.000000e+00 : f32
    %45 = vector.broadcast %cst_23 : f32 to vector<2x128xf32>
    %46 = arith.addf %45, %44 : vector<2x128xf32>
    %47 = arith.divf %45, %46 : vector<2x128xf32>
    %48 = vector.extract_strided_slice %41 {offsets = [0, 128], sizes = [2, 128], strides = [1, 1]} : vector<2x256xf32> to vector<2x128xf32>
    %49 = math.tanh %48 : vector<2x128xf32>
    %50 = arith.negf %48 : vector<2x128xf32>
    %51 = math.exp %50 : vector<2x128xf32>
    %cst_24 = arith.constant 1.000000e+00 : f32
    %52 = vector.broadcast %cst_24 : f32 to vector<2x128xf32>
    %53 = arith.addf %52, %51 : vector<2x128xf32>
    %54 = arith.divf %52, %53 : vector<2x128xf32>
    %55 = vector.extract_strided_slice %47 {offsets = [0, 0], sizes = [2, 64], strides = [1, 1]} : vector<2x128xf32> to vector<2x64xf32>
    %56 = vector.extract_strided_slice %47 {offsets = [0, 64], sizes = [2, 64], strides = [1, 1]} : vector<2x128xf32> to vector<2x64xf32>
    %57 = vector.extract_strided_slice %49 {offsets = [0, 0], sizes = [2, 64], strides = [1, 1]} : vector<2x128xf32> to vector<2x64xf32>
    %58 = vector.extract_strided_slice %54 {offsets = [0, 64], sizes = [2, 64], strides = [1, 1]} : vector<2x128xf32> to vector<2x64xf32>
    %59 = arith.mulf %56, %35 : vector<2x64xf32>
    %60 = arith.mulf %55, %57 : vector<2x64xf32>
    %61 = arith.addf %59, %60 : vector<2x64xf32>
    %62 = math.tanh %61 : vector<2x64xf32>
    %63 = arith.mulf %58, %62 : vector<2x64xf32>
    %64 = arith.truncf %11 : vector<2x64xf32> to vector<2x64xbf16>
    %cst_25 = arith.constant dense<0.000000e+00> : vector<2x256xf32>
    %65 = tpu.matmul %64, %3, %cst_25 {dimension_numbers = #tpu.dot_dimension_numbers<[1], [0], [0], [1], [0, 0, 1, 1], [], []>} : vector<2x64xbf16>, vector<64x256xbf16>, vector<2x256xf32> -> vector<2x256xf32>
    %66 = arith.truncf %37 : vector<2x64xf32> to vector<2x64xbf16>
    %cst_26 = arith.constant dense<0.000000e+00> : vector<2x256xf32>
    %67 = tpu.matmul %66, %1, %cst_26 {dimension_numbers = #tpu.dot_dimension_numbers<[1], [0], [0], [1], [0, 0, 1, 1], [], []>} : vector<2x64xbf16>, vector<64x256xbf16>, vector<2x256xf32> -> vector<2x256xf32>
    %68 = vector.broadcast %5 : vector<1x256xf32> to vector<2x256xf32>
    %69 = arith.addf %67, %68 : vector<2x256xf32>
    %70 = arith.addf %69, %65 : vector<2x256xf32>
    %71 = vector.extract_strided_slice %70 {offsets = [0, 0], sizes = [2, 128], strides = [1, 1]} : vector<2x256xf32> to vector<2x128xf32>
    %72 = arith.negf %71 : vector<2x128xf32>
    %73 = math.exp %72 : vector<2x128xf32>
    %cst_27 = arith.constant 1.000000e+00 : f32
    %74 = vector.broadcast %cst_27 : f32 to vector<2x128xf32>
    %75 = arith.addf %74, %73 : vector<2x128xf32>
    %76 = arith.divf %74, %75 : vector<2x128xf32>
    %77 = vector.extract_strided_slice %70 {offsets = [0, 128], sizes = [2, 128], strides = [1, 1]} : vector<2x256xf32> to vector<2x128xf32>
    %78 = math.tanh %77 : vector<2x128xf32>
    %79 = arith.negf %77 : vector<2x128xf32>
    %80 = math.exp %79 : vector<2x128xf32>
    %cst_28 = arith.constant 1.000000e+00 : f32
    %81 = vector.broadcast %cst_28 : f32 to vector<2x128xf32>
    %82 = arith.addf %81, %80 : vector<2x128xf32>
    %83 = arith.divf %81, %82 : vector<2x128xf32>
    %84 = vector.extract_strided_slice %76 {offsets = [0, 0], sizes = [2, 64], strides = [1, 1]} : vector<2x128xf32> to vector<2x64xf32>
    %85 = vector.extract_strided_slice %76 {offsets = [0, 64], sizes = [2, 64], strides = [1, 1]} : vector<2x128xf32> to vector<2x64xf32>
    %86 = vector.extract_strided_slice %78 {offsets = [0, 0], sizes = [2, 64], strides = [1, 1]} : vector<2x128xf32> to vector<2x64xf32>
    %87 = vector.extract_strided_slice %83 {offsets = [0, 64], sizes = [2, 64], strides = [1, 1]} : vector<2x128xf32> to vector<2x64xf32>
    %88 = arith.mulf %85, %11 : vector<2x64xf32>
    %89 = arith.mulf %84, %86 : vector<2x64xf32>
    %90 = arith.addf %88, %89 : vector<2x64xf32>
    %91 = math.tanh %90 : vector<2x64xf32>
    %92 = arith.mulf %87, %91 : vector<2x64xf32>
    %93 = arith.truncf %63 : vector<2x64xf32> to vector<2x64xbf16>
    %cst_29 = arith.constant dense<0.000000e+00> : vector<2x256xf32>
    %94 = tpu.matmul %93, %2, %cst_29 {dimension_numbers = #tpu.dot_dimension_numbers<[1], [0], [0], [1], [0, 0, 1, 1], [], []>} : vector<2x64xbf16>, vector<64x256xbf16>, vector<2x256xf32> -> vector<2x256xf32>
    %c4 = arith.constant 4 : index
    %c0_30 = arith.constant 0 : index
    %95 = vector.load %arg10[%c4, %c0_30] : memref<16x256xf32, #tpu.memory_space<vmem>>, vector<2x256xf32>
    %96 = arith.addf %95, %94 : vector<2x256xf32>
    %97 = vector.extract_strided_slice %96 {offsets = [0, 0], sizes = [2, 128], strides = [1, 1]} : vector<2x256xf32> to vector<2x128xf32>
    %98 = arith.negf %97 : vector<2x128xf32>
    %99 = math.exp %98 : vector<2x128xf32>
    %cst_31 = arith.constant 1.000000e+00 : f32
    %100 = vector.broadcast %cst_31 : f32 to vector<2x128xf32>
    %101 = arith.addf %100, %99 : vector<2x128xf32>
    %102 = arith.divf %100, %101 : vector<2x128xf32>
    %103 = vector.extract_strided_slice %96 {offsets = [0, 128], sizes = [2, 128], strides = [1, 1]} : vector<2x256xf32> to vector<2x128xf32>
    %104 = math.tanh %103 : vector<2x128xf32>
    %105 = arith.negf %103 : vector<2x128xf32>
    %106 = math.exp %105 : vector<2x128xf32>
    %cst_32 = arith.constant 1.000000e+00 : f32
    %107 = vector.broadcast %cst_32 : f32 to vector<2x128xf32>
    %108 = arith.addf %107, %106 : vector<2x128xf32>
    %109 = arith.divf %107, %108 : vector<2x128xf32>
    %110 = vector.extract_strided_slice %102 {offsets = [0, 0], sizes = [2, 64], strides = [1, 1]} : vector<2x128xf32> to vector<2x64xf32>
    %111 = vector.extract_strided_slice %102 {offsets = [0, 64], sizes = [2, 64], strides = [1, 1]} : vector<2x128xf32> to vector<2x64xf32>
    %112 = vector.extract_strided_slice %104 {offsets = [0, 0], sizes = [2, 64], strides = [1, 1]} : vector<2x128xf32> to vector<2x64xf32>
    %113 = vector.extract_strided_slice %109 {offsets = [0, 64], sizes = [2, 64], strides = [1, 1]} : vector<2x128xf32> to vector<2x64xf32>
    %114 = arith.mulf %111, %61 : vector<2x64xf32>
    %115 = arith.mulf %110, %112 : vector<2x64xf32>
    %116 = arith.addf %114, %115 : vector<2x64xf32>
    %117 = math.tanh %116 : vector<2x64xf32>
    %118 = arith.mulf %113, %117 : vector<2x64xf32>
    %119 = arith.truncf %92 : vector<2x64xf32> to vector<2x64xbf16>
    %cst_33 = arith.constant dense<0.000000e+00> : vector<2x256xf32>
    %120 = tpu.matmul %119, %3, %cst_33 {dimension_numbers = #tpu.dot_dimension_numbers<[1], [0], [0], [1], [0, 0, 1, 1], [], []>} : vector<2x64xbf16>, vector<64x256xbf16>, vector<2x256xf32> -> vector<2x256xf32>
    %121 = arith.truncf %63 : vector<2x64xf32> to vector<2x64xbf16>
    %cst_34 = arith.constant dense<0.000000e+00> : vector<2x256xf32>
    %122 = tpu.matmul %121, %1, %cst_34 {dimension_numbers = #tpu.dot_dimension_numbers<[1], [0], [0], [1], [0, 0, 1, 1], [], []>} : vector<2x64xbf16>, vector<64x256xbf16>, vector<2x256xf32> -> vector<2x256xf32>
    %123 = vector.broadcast %5 : vector<1x256xf32> to vector<2x256xf32>
    %124 = arith.addf %122, %123 : vector<2x256xf32>
    %125 = arith.addf %124, %120 : vector<2x256xf32>
    %126 = vector.extract_strided_slice %125 {offsets = [0, 0], sizes = [2, 128], strides = [1, 1]} : vector<2x256xf32> to vector<2x128xf32>
    %127 = arith.negf %126 : vector<2x128xf32>
    %128 = math.exp %127 : vector<2x128xf32>
    %cst_35 = arith.constant 1.000000e+00 : f32
    %129 = vector.broadcast %cst_35 : f32 to vector<2x128xf32>
    %130 = arith.addf %129, %128 : vector<2x128xf32>
    %131 = arith.divf %129, %130 : vector<2x128xf32>
    %132 = vector.extract_strided_slice %125 {offsets = [0, 128], sizes = [2, 128], strides = [1, 1]} : vector<2x256xf32> to vector<2x128xf32>
    %133 = math.tanh %132 : vector<2x128xf32>
    %134 = arith.negf %132 : vector<2x128xf32>
    %135 = math.exp %134 : vector<2x128xf32>
    %cst_36 = arith.constant 1.000000e+00 : f32
    %136 = vector.broadcast %cst_36 : f32 to vector<2x128xf32>
    %137 = arith.addf %136, %135 : vector<2x128xf32>
    %138 = arith.divf %136, %137 : vector<2x128xf32>
    %139 = vector.extract_strided_slice %131 {offsets = [0, 0], sizes = [2, 64], strides = [1, 1]} : vector<2x128xf32> to vector<2x64xf32>
    %140 = vector.extract_strided_slice %131 {offsets = [0, 64], sizes = [2, 64], strides = [1, 1]} : vector<2x128xf32> to vector<2x64xf32>
    %141 = vector.extract_strided_slice %133 {offsets = [0, 0], sizes = [2, 64], strides = [1, 1]} : vector<2x128xf32> to vector<2x64xf32>
    %142 = vector.extract_strided_slice %138 {offsets = [0, 64], sizes = [2, 64], strides = [1, 1]} : vector<2x128xf32> to vector<2x64xf32>
    %143 = arith.mulf %140, %90 : vector<2x64xf32>
    %144 = arith.mulf %139, %141 : vector<2x64xf32>
    %145 = arith.addf %143, %144 : vector<2x64xf32>
    %146 = math.tanh %145 : vector<2x64xf32>
    %147 = arith.mulf %142, %146 : vector<2x64xf32>
    %148 = arith.truncf %118 : vector<2x64xf32> to vector<2x64xbf16>
    %cst_37 = arith.constant dense<0.000000e+00> : vector<2x256xf32>
    %149 = tpu.matmul %148, %2, %cst_37 {dimension_numbers = #tpu.dot_dimension_numbers<[1], [0], [0], [1], [0, 0, 1, 1], [], []>} : vector<2x64xbf16>, vector<64x256xbf16>, vector<2x256xf32> -> vector<2x256xf32>
    %c6 = arith.constant 6 : index
    %c0_38 = arith.constant 0 : index
    %150 = vector.load %arg10[%c6, %c0_38] : memref<16x256xf32, #tpu.memory_space<vmem>>, vector<2x256xf32>
    %151 = arith.addf %150, %149 : vector<2x256xf32>
    %152 = vector.extract_strided_slice %151 {offsets = [0, 0], sizes = [2, 128], strides = [1, 1]} : vector<2x256xf32> to vector<2x128xf32>
    %153 = arith.negf %152 : vector<2x128xf32>
    %154 = math.exp %153 : vector<2x128xf32>
    %cst_39 = arith.constant 1.000000e+00 : f32
    %155 = vector.broadcast %cst_39 : f32 to vector<2x128xf32>
    %156 = arith.addf %155, %154 : vector<2x128xf32>
    %157 = arith.divf %155, %156 : vector<2x128xf32>
    %158 = vector.extract_strided_slice %151 {offsets = [0, 128], sizes = [2, 128], strides = [1, 1]} : vector<2x256xf32> to vector<2x128xf32>
    %159 = math.tanh %158 : vector<2x128xf32>
    %160 = arith.negf %158 : vector<2x128xf32>
    %161 = math.exp %160 : vector<2x128xf32>
    %cst_40 = arith.constant 1.000000e+00 : f32
    %162 = vector.broadcast %cst_40 : f32 to vector<2x128xf32>
    %163 = arith.addf %162, %161 : vector<2x128xf32>
    %164 = arith.divf %162, %163 : vector<2x128xf32>
    %165 = vector.extract_strided_slice %157 {offsets = [0, 0], sizes = [2, 64], strides = [1, 1]} : vector<2x128xf32> to vector<2x64xf32>
    %166 = vector.extract_strided_slice %157 {offsets = [0, 64], sizes = [2, 64], strides = [1, 1]} : vector<2x128xf32> to vector<2x64xf32>
    %167 = vector.extract_strided_slice %159 {offsets = [0, 0], sizes = [2, 64], strides = [1, 1]} : vector<2x128xf32> to vector<2x64xf32>
    %168 = vector.extract_strided_slice %164 {offsets = [0, 64], sizes = [2, 64], strides = [1, 1]} : vector<2x128xf32> to vector<2x64xf32>
    %169 = arith.mulf %166, %116 : vector<2x64xf32>
    %170 = arith.mulf %165, %167 : vector<2x64xf32>
    %171 = arith.addf %169, %170 : vector<2x64xf32>
    %172 = math.tanh %171 : vector<2x64xf32>
    %173 = arith.mulf %168, %172 : vector<2x64xf32>
    %174 = arith.truncf %147 : vector<2x64xf32> to vector<2x64xbf16>
    %cst_41 = arith.constant dense<0.000000e+00> : vector<2x256xf32>
    %175 = tpu.matmul %174, %3, %cst_41 {dimension_numbers = #tpu.dot_dimension_numbers<[1], [0], [0], [1], [0, 0, 1, 1], [], []>} : vector<2x64xbf16>, vector<64x256xbf16>, vector<2x256xf32> -> vector<2x256xf32>
    %176 = arith.truncf %118 : vector<2x64xf32> to vector<2x64xbf16>
    %cst_42 = arith.constant dense<0.000000e+00> : vector<2x256xf32>
    %177 = tpu.matmul %176, %1, %cst_42 {dimension_numbers = #tpu.dot_dimension_numbers<[1], [0], [0], [1], [0, 0, 1, 1], [], []>} : vector<2x64xbf16>, vector<64x256xbf16>, vector<2x256xf32> -> vector<2x256xf32>
    %178 = vector.broadcast %5 : vector<1x256xf32> to vector<2x256xf32>
    %179 = arith.addf %177, %178 : vector<2x256xf32>
    %180 = arith.addf %179, %175 : vector<2x256xf32>
    %181 = vector.extract_strided_slice %180 {offsets = [0, 0], sizes = [2, 128], strides = [1, 1]} : vector<2x256xf32> to vector<2x128xf32>
    %182 = arith.negf %181 : vector<2x128xf32>
    %183 = math.exp %182 : vector<2x128xf32>
    %cst_43 = arith.constant 1.000000e+00 : f32
    %184 = vector.broadcast %cst_43 : f32 to vector<2x128xf32>
    %185 = arith.addf %184, %183 : vector<2x128xf32>
    %186 = arith.divf %184, %185 : vector<2x128xf32>
    %187 = vector.extract_strided_slice %180 {offsets = [0, 128], sizes = [2, 128], strides = [1, 1]} : vector<2x256xf32> to vector<2x128xf32>
    %188 = math.tanh %187 : vector<2x128xf32>
    %189 = arith.negf %187 : vector<2x128xf32>
    %190 = math.exp %189 : vector<2x128xf32>
    %cst_44 = arith.constant 1.000000e+00 : f32
    %191 = vector.broadcast %cst_44 : f32 to vector<2x128xf32>
    %192 = arith.addf %191, %190 : vector<2x128xf32>
    %193 = arith.divf %191, %192 : vector<2x128xf32>
    %194 = vector.extract_strided_slice %186 {offsets = [0, 0], sizes = [2, 64], strides = [1, 1]} : vector<2x128xf32> to vector<2x64xf32>
    %195 = vector.extract_strided_slice %186 {offsets = [0, 64], sizes = [2, 64], strides = [1, 1]} : vector<2x128xf32> to vector<2x64xf32>
    %196 = vector.extract_strided_slice %188 {offsets = [0, 0], sizes = [2, 64], strides = [1, 1]} : vector<2x128xf32> to vector<2x64xf32>
    %197 = vector.extract_strided_slice %193 {offsets = [0, 64], sizes = [2, 64], strides = [1, 1]} : vector<2x128xf32> to vector<2x64xf32>
    %198 = arith.mulf %195, %145 : vector<2x64xf32>
    %199 = arith.mulf %194, %196 : vector<2x64xf32>
    %200 = arith.addf %198, %199 : vector<2x64xf32>
    %201 = math.tanh %200 : vector<2x64xf32>
    %202 = arith.mulf %197, %201 : vector<2x64xf32>
    %203 = arith.truncf %173 : vector<2x64xf32> to vector<2x64xbf16>
    %cst_45 = arith.constant dense<0.000000e+00> : vector<2x256xf32>
    %204 = tpu.matmul %203, %2, %cst_45 {dimension_numbers = #tpu.dot_dimension_numbers<[1], [0], [0], [1], [0, 0, 1, 1], [], []>} : vector<2x64xbf16>, vector<64x256xbf16>, vector<2x256xf32> -> vector<2x256xf32>
    %c8 = arith.constant 8 : index
    %c0_46 = arith.constant 0 : index
    %205 = vector.load %arg10[%c8, %c0_46] : memref<16x256xf32, #tpu.memory_space<vmem>>, vector<2x256xf32>
    %206 = arith.addf %205, %204 : vector<2x256xf32>
    %207 = vector.extract_strided_slice %206 {offsets = [0, 0], sizes = [2, 128], strides = [1, 1]} : vector<2x256xf32> to vector<2x128xf32>
    %208 = arith.negf %207 : vector<2x128xf32>
    %209 = math.exp %208 : vector<2x128xf32>
    %cst_47 = arith.constant 1.000000e+00 : f32
    %210 = vector.broadcast %cst_47 : f32 to vector<2x128xf32>
    %211 = arith.addf %210, %209 : vector<2x128xf32>
    %212 = arith.divf %210, %211 : vector<2x128xf32>
    %213 = vector.extract_strided_slice %206 {offsets = [0, 128], sizes = [2, 128], strides = [1, 1]} : vector<2x256xf32> to vector<2x128xf32>
    %214 = math.tanh %213 : vector<2x128xf32>
    %215 = arith.negf %213 : vector<2x128xf32>
    %216 = math.exp %215 : vector<2x128xf32>
    %cst_48 = arith.constant 1.000000e+00 : f32
    %217 = vector.broadcast %cst_48 : f32 to vector<2x128xf32>
    %218 = arith.addf %217, %216 : vector<2x128xf32>
    %219 = arith.divf %217, %218 : vector<2x128xf32>
    %220 = vector.extract_strided_slice %212 {offsets = [0, 0], sizes = [2, 64], strides = [1, 1]} : vector<2x128xf32> to vector<2x64xf32>
    %221 = vector.extract_strided_slice %212 {offsets = [0, 64], sizes = [2, 64], strides = [1, 1]} : vector<2x128xf32> to vector<2x64xf32>
    %222 = vector.extract_strided_slice %214 {offsets = [0, 0], sizes = [2, 64], strides = [1, 1]} : vector<2x128xf32> to vector<2x64xf32>
    %223 = vector.extract_strided_slice %219 {offsets = [0, 64], sizes = [2, 64], strides = [1, 1]} : vector<2x128xf32> to vector<2x64xf32>
    %224 = arith.mulf %221, %171 : vector<2x64xf32>
    %225 = arith.mulf %220, %222 : vector<2x64xf32>
    %226 = arith.addf %224, %225 : vector<2x64xf32>
    %227 = math.tanh %226 : vector<2x64xf32>
    %228 = arith.mulf %223, %227 : vector<2x64xf32>
    %229 = arith.truncf %202 : vector<2x64xf32> to vector<2x64xbf16>
    %cst_49 = arith.constant dense<0.000000e+00> : vector<2x256xf32>
    %230 = tpu.matmul %229, %3, %cst_49 {dimension_numbers = #tpu.dot_dimension_numbers<[1], [0], [0], [1], [0, 0, 1, 1], [], []>} : vector<2x64xbf16>, vector<64x256xbf16>, vector<2x256xf32> -> vector<2x256xf32>
    %231 = arith.truncf %173 : vector<2x64xf32> to vector<2x64xbf16>
    %cst_50 = arith.constant dense<0.000000e+00> : vector<2x256xf32>
    %232 = tpu.matmul %231, %1, %cst_50 {dimension_numbers = #tpu.dot_dimension_numbers<[1], [0], [0], [1], [0, 0, 1, 1], [], []>} : vector<2x64xbf16>, vector<64x256xbf16>, vector<2x256xf32> -> vector<2x256xf32>
    %233 = vector.broadcast %5 : vector<1x256xf32> to vector<2x256xf32>
    %234 = arith.addf %232, %233 : vector<2x256xf32>
    %235 = arith.addf %234, %230 : vector<2x256xf32>
    %236 = vector.extract_strided_slice %235 {offsets = [0, 0], sizes = [2, 128], strides = [1, 1]} : vector<2x256xf32> to vector<2x128xf32>
    %237 = arith.negf %236 : vector<2x128xf32>
    %238 = math.exp %237 : vector<2x128xf32>
    %cst_51 = arith.constant 1.000000e+00 : f32
    %239 = vector.broadcast %cst_51 : f32 to vector<2x128xf32>
    %240 = arith.addf %239, %238 : vector<2x128xf32>
    %241 = arith.divf %239, %240 : vector<2x128xf32>
    %242 = vector.extract_strided_slice %235 {offsets = [0, 128], sizes = [2, 128], strides = [1, 1]} : vector<2x256xf32> to vector<2x128xf32>
    %243 = math.tanh %242 : vector<2x128xf32>
    %244 = arith.negf %242 : vector<2x128xf32>
    %245 = math.exp %244 : vector<2x128xf32>
    %cst_52 = arith.constant 1.000000e+00 : f32
    %246 = vector.broadcast %cst_52 : f32 to vector<2x128xf32>
    %247 = arith.addf %246, %245 : vector<2x128xf32>
    %248 = arith.divf %246, %247 : vector<2x128xf32>
    %249 = vector.extract_strided_slice %241 {offsets = [0, 0], sizes = [2, 64], strides = [1, 1]} : vector<2x128xf32> to vector<2x64xf32>
    %250 = vector.extract_strided_slice %241 {offsets = [0, 64], sizes = [2, 64], strides = [1, 1]} : vector<2x128xf32> to vector<2x64xf32>
    %251 = vector.extract_strided_slice %243 {offsets = [0, 0], sizes = [2, 64], strides = [1, 1]} : vector<2x128xf32> to vector<2x64xf32>
    %252 = vector.extract_strided_slice %248 {offsets = [0, 64], sizes = [2, 64], strides = [1, 1]} : vector<2x128xf32> to vector<2x64xf32>
    %253 = arith.mulf %250, %200 : vector<2x64xf32>
    %254 = arith.mulf %249, %251 : vector<2x64xf32>
    %255 = arith.addf %253, %254 : vector<2x64xf32>
    %256 = math.tanh %255 : vector<2x64xf32>
    %257 = arith.mulf %252, %256 : vector<2x64xf32>
    %258 = arith.truncf %228 : vector<2x64xf32> to vector<2x64xbf16>
    %cst_53 = arith.constant dense<0.000000e+00> : vector<2x256xf32>
    %259 = tpu.matmul %258, %2, %cst_53 {dimension_numbers = #tpu.dot_dimension_numbers<[1], [0], [0], [1], [0, 0, 1, 1], [], []>} : vector<2x64xbf16>, vector<64x256xbf16>, vector<2x256xf32> -> vector<2x256xf32>
    %c10 = arith.constant 10 : index
    %c0_54 = arith.constant 0 : index
    %260 = vector.load %arg10[%c10, %c0_54] : memref<16x256xf32, #tpu.memory_space<vmem>>, vector<2x256xf32>
    %261 = arith.addf %260, %259 : vector<2x256xf32>
    %262 = vector.extract_strided_slice %261 {offsets = [0, 0], sizes = [2, 128], strides = [1, 1]} : vector<2x256xf32> to vector<2x128xf32>
    %263 = arith.negf %262 : vector<2x128xf32>
    %264 = math.exp %263 : vector<2x128xf32>
    %cst_55 = arith.constant 1.000000e+00 : f32
    %265 = vector.broadcast %cst_55 : f32 to vector<2x128xf32>
    %266 = arith.addf %265, %264 : vector<2x128xf32>
    %267 = arith.divf %265, %266 : vector<2x128xf32>
    %268 = vector.extract_strided_slice %261 {offsets = [0, 128], sizes = [2, 128], strides = [1, 1]} : vector<2x256xf32> to vector<2x128xf32>
    %269 = math.tanh %268 : vector<2x128xf32>
    %270 = arith.negf %268 : vector<2x128xf32>
    %271 = math.exp %270 : vector<2x128xf32>
    %cst_56 = arith.constant 1.000000e+00 : f32
    %272 = vector.broadcast %cst_56 : f32 to vector<2x128xf32>
    %273 = arith.addf %272, %271 : vector<2x128xf32>
    %274 = arith.divf %272, %273 : vector<2x128xf32>
    %275 = vector.extract_strided_slice %267 {offsets = [0, 0], sizes = [2, 64], strides = [1, 1]} : vector<2x128xf32> to vector<2x64xf32>
    %276 = vector.extract_strided_slice %267 {offsets = [0, 64], sizes = [2, 64], strides = [1, 1]} : vector<2x128xf32> to vector<2x64xf32>
    %277 = vector.extract_strided_slice %269 {offsets = [0, 0], sizes = [2, 64], strides = [1, 1]} : vector<2x128xf32> to vector<2x64xf32>
    %278 = vector.extract_strided_slice %274 {offsets = [0, 64], sizes = [2, 64], strides = [1, 1]} : vector<2x128xf32> to vector<2x64xf32>
    %279 = arith.mulf %276, %226 : vector<2x64xf32>
    %280 = arith.mulf %275, %277 : vector<2x64xf32>
    %281 = arith.addf %279, %280 : vector<2x64xf32>
    %282 = math.tanh %281 : vector<2x64xf32>
    %283 = arith.mulf %278, %282 : vector<2x64xf32>
    %284 = arith.truncf %257 : vector<2x64xf32> to vector<2x64xbf16>
    %cst_57 = arith.constant dense<0.000000e+00> : vector<2x256xf32>
    %285 = tpu.matmul %284, %3, %cst_57 {dimension_numbers = #tpu.dot_dimension_numbers<[1], [0], [0], [1], [0, 0, 1, 1], [], []>} : vector<2x64xbf16>, vector<64x256xbf16>, vector<2x256xf32> -> vector<2x256xf32>
    %286 = arith.truncf %228 : vector<2x64xf32> to vector<2x64xbf16>
    %cst_58 = arith.constant dense<0.000000e+00> : vector<2x256xf32>
    %287 = tpu.matmul %286, %1, %cst_58 {dimension_numbers = #tpu.dot_dimension_numbers<[1], [0], [0], [1], [0, 0, 1, 1], [], []>} : vector<2x64xbf16>, vector<64x256xbf16>, vector<2x256xf32> -> vector<2x256xf32>
    %288 = vector.broadcast %5 : vector<1x256xf32> to vector<2x256xf32>
    %289 = arith.addf %287, %288 : vector<2x256xf32>
    %290 = arith.addf %289, %285 : vector<2x256xf32>
    %291 = vector.extract_strided_slice %290 {offsets = [0, 0], sizes = [2, 128], strides = [1, 1]} : vector<2x256xf32> to vector<2x128xf32>
    %292 = arith.negf %291 : vector<2x128xf32>
    %293 = math.exp %292 : vector<2x128xf32>
    %cst_59 = arith.constant 1.000000e+00 : f32
    %294 = vector.broadcast %cst_59 : f32 to vector<2x128xf32>
    %295 = arith.addf %294, %293 : vector<2x128xf32>
    %296 = arith.divf %294, %295 : vector<2x128xf32>
    %297 = vector.extract_strided_slice %290 {offsets = [0, 128], sizes = [2, 128], strides = [1, 1]} : vector<2x256xf32> to vector<2x128xf32>
    %298 = math.tanh %297 : vector<2x128xf32>
    %299 = arith.negf %297 : vector<2x128xf32>
    %300 = math.exp %299 : vector<2x128xf32>
    %cst_60 = arith.constant 1.000000e+00 : f32
    %301 = vector.broadcast %cst_60 : f32 to vector<2x128xf32>
    %302 = arith.addf %301, %300 : vector<2x128xf32>
    %303 = arith.divf %301, %302 : vector<2x128xf32>
    %304 = vector.extract_strided_slice %296 {offsets = [0, 0], sizes = [2, 64], strides = [1, 1]} : vector<2x128xf32> to vector<2x64xf32>
    %305 = vector.extract_strided_slice %296 {offsets = [0, 64], sizes = [2, 64], strides = [1, 1]} : vector<2x128xf32> to vector<2x64xf32>
    %306 = vector.extract_strided_slice %298 {offsets = [0, 0], sizes = [2, 64], strides = [1, 1]} : vector<2x128xf32> to vector<2x64xf32>
    %307 = vector.extract_strided_slice %303 {offsets = [0, 64], sizes = [2, 64], strides = [1, 1]} : vector<2x128xf32> to vector<2x64xf32>
    %308 = arith.mulf %305, %255 : vector<2x64xf32>
    %309 = arith.mulf %304, %306 : vector<2x64xf32>
    %310 = arith.addf %308, %309 : vector<2x64xf32>
    %311 = math.tanh %310 : vector<2x64xf32>
    %312 = arith.mulf %307, %311 : vector<2x64xf32>
    %313 = arith.truncf %283 : vector<2x64xf32> to vector<2x64xbf16>
    %cst_61 = arith.constant dense<0.000000e+00> : vector<2x256xf32>
    %314 = tpu.matmul %313, %2, %cst_61 {dimension_numbers = #tpu.dot_dimension_numbers<[1], [0], [0], [1], [0, 0, 1, 1], [], []>} : vector<2x64xbf16>, vector<64x256xbf16>, vector<2x256xf32> -> vector<2x256xf32>
    %c12 = arith.constant 12 : index
    %c0_62 = arith.constant 0 : index
    %315 = vector.load %arg10[%c12, %c0_62] : memref<16x256xf32, #tpu.memory_space<vmem>>, vector<2x256xf32>
    %316 = arith.addf %315, %314 : vector<2x256xf32>
    %317 = vector.extract_strided_slice %316 {offsets = [0, 0], sizes = [2, 128], strides = [1, 1]} : vector<2x256xf32> to vector<2x128xf32>
    %318 = arith.negf %317 : vector<2x128xf32>
    %319 = math.exp %318 : vector<2x128xf32>
    %cst_63 = arith.constant 1.000000e+00 : f32
    %320 = vector.broadcast %cst_63 : f32 to vector<2x128xf32>
    %321 = arith.addf %320, %319 : vector<2x128xf32>
    %322 = arith.divf %320, %321 : vector<2x128xf32>
    %323 = vector.extract_strided_slice %316 {offsets = [0, 128], sizes = [2, 128], strides = [1, 1]} : vector<2x256xf32> to vector<2x128xf32>
    %324 = math.tanh %323 : vector<2x128xf32>
    %325 = arith.negf %323 : vector<2x128xf32>
    %326 = math.exp %325 : vector<2x128xf32>
    %cst_64 = arith.constant 1.000000e+00 : f32
    %327 = vector.broadcast %cst_64 : f32 to vector<2x128xf32>
    %328 = arith.addf %327, %326 : vector<2x128xf32>
    %329 = arith.divf %327, %328 : vector<2x128xf32>
    %330 = vector.extract_strided_slice %322 {offsets = [0, 0], sizes = [2, 64], strides = [1, 1]} : vector<2x128xf32> to vector<2x64xf32>
    %331 = vector.extract_strided_slice %322 {offsets = [0, 64], sizes = [2, 64], strides = [1, 1]} : vector<2x128xf32> to vector<2x64xf32>
    %332 = vector.extract_strided_slice %324 {offsets = [0, 0], sizes = [2, 64], strides = [1, 1]} : vector<2x128xf32> to vector<2x64xf32>
    %333 = vector.extract_strided_slice %329 {offsets = [0, 64], sizes = [2, 64], strides = [1, 1]} : vector<2x128xf32> to vector<2x64xf32>
    %334 = arith.mulf %331, %281 : vector<2x64xf32>
    %335 = arith.mulf %330, %332 : vector<2x64xf32>
    %336 = arith.addf %334, %335 : vector<2x64xf32>
    %337 = math.tanh %336 : vector<2x64xf32>
    %338 = arith.mulf %333, %337 : vector<2x64xf32>
    %339 = arith.truncf %312 : vector<2x64xf32> to vector<2x64xbf16>
    %cst_65 = arith.constant dense<0.000000e+00> : vector<2x256xf32>
    %340 = tpu.matmul %339, %3, %cst_65 {dimension_numbers = #tpu.dot_dimension_numbers<[1], [0], [0], [1], [0, 0, 1, 1], [], []>} : vector<2x64xbf16>, vector<64x256xbf16>, vector<2x256xf32> -> vector<2x256xf32>
    %341 = arith.truncf %283 : vector<2x64xf32> to vector<2x64xbf16>
    %cst_66 = arith.constant dense<0.000000e+00> : vector<2x256xf32>
    %342 = tpu.matmul %341, %1, %cst_66 {dimension_numbers = #tpu.dot_dimension_numbers<[1], [0], [0], [1], [0, 0, 1, 1], [], []>} : vector<2x64xbf16>, vector<64x256xbf16>, vector<2x256xf32> -> vector<2x256xf32>
    %343 = vector.broadcast %5 : vector<1x256xf32> to vector<2x256xf32>
    %344 = arith.addf %342, %343 : vector<2x256xf32>
    %345 = arith.addf %344, %340 : vector<2x256xf32>
    %346 = vector.extract_strided_slice %345 {offsets = [0, 0], sizes = [2, 128], strides = [1, 1]} : vector<2x256xf32> to vector<2x128xf32>
    %347 = arith.negf %346 : vector<2x128xf32>
    %348 = math.exp %347 : vector<2x128xf32>
    %cst_67 = arith.constant 1.000000e+00 : f32
    %349 = vector.broadcast %cst_67 : f32 to vector<2x128xf32>
    %350 = arith.addf %349, %348 : vector<2x128xf32>
    %351 = arith.divf %349, %350 : vector<2x128xf32>
    %352 = vector.extract_strided_slice %345 {offsets = [0, 128], sizes = [2, 128], strides = [1, 1]} : vector<2x256xf32> to vector<2x128xf32>
    %353 = math.tanh %352 : vector<2x128xf32>
    %354 = arith.negf %352 : vector<2x128xf32>
    %355 = math.exp %354 : vector<2x128xf32>
    %cst_68 = arith.constant 1.000000e+00 : f32
    %356 = vector.broadcast %cst_68 : f32 to vector<2x128xf32>
    %357 = arith.addf %356, %355 : vector<2x128xf32>
    %358 = arith.divf %356, %357 : vector<2x128xf32>
    %359 = vector.extract_strided_slice %351 {offsets = [0, 0], sizes = [2, 64], strides = [1, 1]} : vector<2x128xf32> to vector<2x64xf32>
    %360 = vector.extract_strided_slice %351 {offsets = [0, 64], sizes = [2, 64], strides = [1, 1]} : vector<2x128xf32> to vector<2x64xf32>
    %361 = vector.extract_strided_slice %353 {offsets = [0, 0], sizes = [2, 64], strides = [1, 1]} : vector<2x128xf32> to vector<2x64xf32>
    %362 = vector.extract_strided_slice %358 {offsets = [0, 64], sizes = [2, 64], strides = [1, 1]} : vector<2x128xf32> to vector<2x64xf32>
    %363 = arith.mulf %360, %310 : vector<2x64xf32>
    %364 = arith.mulf %359, %361 : vector<2x64xf32>
    %365 = arith.addf %363, %364 : vector<2x64xf32>
    %366 = math.tanh %365 : vector<2x64xf32>
    %367 = arith.mulf %362, %366 : vector<2x64xf32>
    %368 = arith.truncf %338 : vector<2x64xf32> to vector<2x64xbf16>
    %cst_69 = arith.constant dense<0.000000e+00> : vector<2x256xf32>
    %369 = tpu.matmul %368, %2, %cst_69 {dimension_numbers = #tpu.dot_dimension_numbers<[1], [0], [0], [1], [0, 0, 1, 1], [], []>} : vector<2x64xbf16>, vector<64x256xbf16>, vector<2x256xf32> -> vector<2x256xf32>
    %c14 = arith.constant 14 : index
    %c0_70 = arith.constant 0 : index
    %370 = vector.load %arg10[%c14, %c0_70] : memref<16x256xf32, #tpu.memory_space<vmem>>, vector<2x256xf32>
    %371 = arith.addf %370, %369 : vector<2x256xf32>
    %372 = vector.extract_strided_slice %371 {offsets = [0, 0], sizes = [2, 128], strides = [1, 1]} : vector<2x256xf32> to vector<2x128xf32>
    %373 = arith.negf %372 : vector<2x128xf32>
    %374 = math.exp %373 : vector<2x128xf32>
    %cst_71 = arith.constant 1.000000e+00 : f32
    %375 = vector.broadcast %cst_71 : f32 to vector<2x128xf32>
    %376 = arith.addf %375, %374 : vector<2x128xf32>
    %377 = arith.divf %375, %376 : vector<2x128xf32>
    %378 = vector.extract_strided_slice %371 {offsets = [0, 128], sizes = [2, 128], strides = [1, 1]} : vector<2x256xf32> to vector<2x128xf32>
    %379 = math.tanh %378 : vector<2x128xf32>
    %380 = arith.negf %378 : vector<2x128xf32>
    %381 = math.exp %380 : vector<2x128xf32>
    %cst_72 = arith.constant 1.000000e+00 : f32
    %382 = vector.broadcast %cst_72 : f32 to vector<2x128xf32>
    %383 = arith.addf %382, %381 : vector<2x128xf32>
    %384 = arith.divf %382, %383 : vector<2x128xf32>
    %385 = vector.extract_strided_slice %377 {offsets = [0, 0], sizes = [2, 64], strides = [1, 1]} : vector<2x128xf32> to vector<2x64xf32>
    %386 = vector.extract_strided_slice %377 {offsets = [0, 64], sizes = [2, 64], strides = [1, 1]} : vector<2x128xf32> to vector<2x64xf32>
    %387 = vector.extract_strided_slice %379 {offsets = [0, 0], sizes = [2, 64], strides = [1, 1]} : vector<2x128xf32> to vector<2x64xf32>
    %388 = vector.extract_strided_slice %384 {offsets = [0, 64], sizes = [2, 64], strides = [1, 1]} : vector<2x128xf32> to vector<2x64xf32>
    %389 = arith.mulf %386, %336 : vector<2x64xf32>
    %390 = arith.mulf %385, %387 : vector<2x64xf32>
    %391 = arith.addf %389, %390 : vector<2x64xf32>
    %392 = math.tanh %391 : vector<2x64xf32>
    %393 = arith.mulf %388, %392 : vector<2x64xf32>
    %394 = arith.truncf %367 : vector<2x64xf32> to vector<2x64xbf16>
    %cst_73 = arith.constant dense<0.000000e+00> : vector<2x256xf32>
    %395 = tpu.matmul %394, %3, %cst_73 {dimension_numbers = #tpu.dot_dimension_numbers<[1], [0], [0], [1], [0, 0, 1, 1], [], []>} : vector<2x64xbf16>, vector<64x256xbf16>, vector<2x256xf32> -> vector<2x256xf32>
    %396 = arith.truncf %338 : vector<2x64xf32> to vector<2x64xbf16>
    %cst_74 = arith.constant dense<0.000000e+00> : vector<2x256xf32>
    %397 = tpu.matmul %396, %1, %cst_74 {dimension_numbers = #tpu.dot_dimension_numbers<[1], [0], [0], [1], [0, 0, 1, 1], [], []>} : vector<2x64xbf16>, vector<64x256xbf16>, vector<2x256xf32> -> vector<2x256xf32>
    %398 = vector.broadcast %5 : vector<1x256xf32> to vector<2x256xf32>
    %399 = arith.addf %397, %398 : vector<2x256xf32>
    %400 = arith.addf %399, %395 : vector<2x256xf32>
    %401 = vector.extract_strided_slice %400 {offsets = [0, 0], sizes = [2, 128], strides = [1, 1]} : vector<2x256xf32> to vector<2x128xf32>
    %402 = arith.negf %401 : vector<2x128xf32>
    %403 = math.exp %402 : vector<2x128xf32>
    %cst_75 = arith.constant 1.000000e+00 : f32
    %404 = vector.broadcast %cst_75 : f32 to vector<2x128xf32>
    %405 = arith.addf %404, %403 : vector<2x128xf32>
    %406 = arith.divf %404, %405 : vector<2x128xf32>
    %407 = vector.extract_strided_slice %400 {offsets = [0, 128], sizes = [2, 128], strides = [1, 1]} : vector<2x256xf32> to vector<2x128xf32>
    %408 = math.tanh %407 : vector<2x128xf32>
    %409 = arith.negf %407 : vector<2x128xf32>
    %410 = math.exp %409 : vector<2x128xf32>
    %cst_76 = arith.constant 1.000000e+00 : f32
    %411 = vector.broadcast %cst_76 : f32 to vector<2x128xf32>
    %412 = arith.addf %411, %410 : vector<2x128xf32>
    %413 = arith.divf %411, %412 : vector<2x128xf32>
    %414 = vector.extract_strided_slice %406 {offsets = [0, 0], sizes = [2, 64], strides = [1, 1]} : vector<2x128xf32> to vector<2x64xf32>
    %415 = vector.extract_strided_slice %406 {offsets = [0, 64], sizes = [2, 64], strides = [1, 1]} : vector<2x128xf32> to vector<2x64xf32>
    %416 = vector.extract_strided_slice %408 {offsets = [0, 0], sizes = [2, 64], strides = [1, 1]} : vector<2x128xf32> to vector<2x64xf32>
    %417 = vector.extract_strided_slice %413 {offsets = [0, 64], sizes = [2, 64], strides = [1, 1]} : vector<2x128xf32> to vector<2x64xf32>
    %418 = arith.mulf %415, %365 : vector<2x64xf32>
    %419 = arith.mulf %414, %416 : vector<2x64xf32>
    %420 = arith.addf %418, %419 : vector<2x64xf32>
    %421 = math.tanh %420 : vector<2x64xf32>
    %422 = arith.mulf %417, %421 : vector<2x64xf32>
    %423 = arith.truncf %422 : vector<2x64xf32> to vector<2x64xbf16>
    %cst_77 = arith.constant dense<0.000000e+00> : vector<2x256xf32>
    %424 = tpu.matmul %423, %3, %cst_77 {dimension_numbers = #tpu.dot_dimension_numbers<[1], [0], [0], [1], [0, 0, 1, 1], [], []>} : vector<2x64xbf16>, vector<64x256xbf16>, vector<2x256xf32> -> vector<2x256xf32>
    %425 = arith.truncf %393 : vector<2x64xf32> to vector<2x64xbf16>
    %cst_78 = arith.constant dense<0.000000e+00> : vector<2x256xf32>
    %426 = tpu.matmul %425, %1, %cst_78 {dimension_numbers = #tpu.dot_dimension_numbers<[1], [0], [0], [1], [0, 0, 1, 1], [], []>} : vector<2x64xbf16>, vector<64x256xbf16>, vector<2x256xf32> -> vector<2x256xf32>
    %427 = vector.broadcast %5 : vector<1x256xf32> to vector<2x256xf32>
    %428 = arith.addf %426, %427 : vector<2x256xf32>
    %429 = arith.addf %428, %424 : vector<2x256xf32>
    %430 = vector.extract_strided_slice %429 {offsets = [0, 0], sizes = [2, 128], strides = [1, 1]} : vector<2x256xf32> to vector<2x128xf32>
    %431 = arith.negf %430 : vector<2x128xf32>
    %432 = math.exp %431 : vector<2x128xf32>
    %cst_79 = arith.constant 1.000000e+00 : f32
    %433 = vector.broadcast %cst_79 : f32 to vector<2x128xf32>
    %434 = arith.addf %433, %432 : vector<2x128xf32>
    %435 = arith.divf %433, %434 : vector<2x128xf32>
    %436 = vector.extract_strided_slice %429 {offsets = [0, 128], sizes = [2, 128], strides = [1, 1]} : vector<2x256xf32> to vector<2x128xf32>
    %437 = math.tanh %436 : vector<2x128xf32>
    %438 = arith.negf %436 : vector<2x128xf32>
    %439 = math.exp %438 : vector<2x128xf32>
    %cst_80 = arith.constant 1.000000e+00 : f32
    %440 = vector.broadcast %cst_80 : f32 to vector<2x128xf32>
    %441 = arith.addf %440, %439 : vector<2x128xf32>
    %442 = arith.divf %440, %441 : vector<2x128xf32>
    %443 = vector.extract_strided_slice %435 {offsets = [0, 0], sizes = [2, 64], strides = [1, 1]} : vector<2x128xf32> to vector<2x64xf32>
    %444 = vector.extract_strided_slice %435 {offsets = [0, 64], sizes = [2, 64], strides = [1, 1]} : vector<2x128xf32> to vector<2x64xf32>
    %445 = vector.extract_strided_slice %437 {offsets = [0, 0], sizes = [2, 64], strides = [1, 1]} : vector<2x128xf32> to vector<2x64xf32>
    %446 = vector.extract_strided_slice %442 {offsets = [0, 64], sizes = [2, 64], strides = [1, 1]} : vector<2x128xf32> to vector<2x64xf32>
    %447 = arith.mulf %444, %420 : vector<2x64xf32>
    %448 = arith.mulf %443, %445 : vector<2x64xf32>
    %449 = arith.addf %447, %448 : vector<2x64xf32>
    %450 = math.tanh %449 : vector<2x64xf32>
    %451 = arith.mulf %446, %450 : vector<2x64xf32>
    %c0_81 = arith.constant 0 : index
    %c0_82 = arith.constant 0 : index
    %452 = vector.load %arg7[%c0_81, %c0_82] : memref<64x1xf32, #tpu.memory_space<vmem>>, vector<64x1xf32>
    %cst_83 = arith.constant dense<0.000000e+00> : vector<2x1xf32>
    %453 = tpu.matmul %451, %452, %cst_83 {dimension_numbers = #tpu.dot_dimension_numbers<[1], [0], [0], [1], [0, 0, 1, 1], [], []>} : vector<2x64xf32>, vector<64x1xf32>, vector<2x1xf32> -> vector<2x1xf32>
    %c0_84 = arith.constant 0 : index
    %c0_85 = arith.constant 0 : index
    %454 = vector.load %arg8[%c0_84, %c0_85] : memref<1x1xf32, #tpu.memory_space<vmem>>, vector<1x1xf32>
    %455 = vector.broadcast %454 : vector<1x1xf32> to vector<2x1xf32>
    %456 = arith.addf %453, %455 : vector<2x1xf32>
    %c0_86 = arith.constant 0 : index
    %c0_87 = arith.constant 0 : index
    %457 = vector.load %arg9[%c0_86, %c0_87] : memref<2x1xf32, #tpu.memory_space<vmem>>, vector<2x1xf32>
    tpu.vector_store %arg9[%c0_86, %c0_87], %456 {strides = array<i32>} : memref<2x1xf32, #tpu.memory_space<vmem>>, vector<2x1xf32>,
    return
  }
}

</mosaic_0001>

<llo_original>
// kernel: tpu_custom_call.1
$region0: #{tpu_custom_call.1}
  #allocation0 [shape = 'u32[]', space=smem, size = 0x4, offset = 0x4, fixed_abs, tag = 'smem constant byte address 0x4 - core index']
  #allocation1 [shape = 'u32[144,128]{1,0:T(1,128)}', space=vmem, size = 0x12000, scoped, tag = 'internal scratch']
  #allocation2 [shape = 'f32[16,256]{1,0:T(8,128)}', space=vmem, size = 0x4000, scoped, tag = 'scratch operand']
  #allocation3 [shape = 'f32[1,1]{1,0:T(1,128)S(1)}', space=vmem, size = 0x200, scoped, tag = 'scoped memory for tpu_custom_call.1']
  %s0 = inlined_call_operand.vmem [shape: bf16[16,6], index: 0, kind: input, shape index: {}]
  %s1 = inlined_call_operand.vmem [shape: bf16[6,256], index: 1, kind: input, shape index: {}]
  %s2 = inlined_call_operand.vmem [shape: bf16[64,256], index: 2, kind: input, shape index: {}]
  %s3 = inlined_call_operand.vmem [shape: f32[1,256], index: 3, kind: input, shape index: {}]
  %s4 = inlined_call_operand.hbm [shape: bf16[64,256], index: 4, kind: input, shape index: {}]
  %s5 = inlined_call_operand.hbm [shape: bf16[64,256], index: 5, kind: input, shape index: {}]
  %s6 = inlined_call_operand.vmem [shape: f32[1,256], index: 6, kind: input, shape index: {}]
  %s7 = inlined_call_operand.vmem [shape: f32[64,1], index: 7, kind: input, shape index: {}]
  %s8 = inlined_call_operand.<no memory space> [shape: f32[1,1], index: 8, kind: input, shape index: {}]
  %s9 = inlined_call_operand.vmem [shape: f32[2,1], index: 9, kind: output, shape index: {}]
  %s10 = sld [smem:[#allocation0]]
  $region54: #{tpu_custom_call.1} parent=0
    _
  %s12 = ssub.s32 1, %s10
  %s13 = scalar_select 0, %s12, %s10
  %v14 = vstv %s8
  %15 = vst [vmem:[#allocation3] sm:$0x1] %v14
  $region1: #{tpu_custom_call.1} parent=0
    #allocation4 [shape = 'u8[32768]{0}', space=vmem, size = 0x8000, scoped, tag = 'input window, operand 4, single buffered']
    #allocation5 [shape = 's32[1]{0}', space=sflag, size = 0x4, scoped, tag = 'scoped memory for tpu_custom_call.1']
    #allocation6 [shape = 'u8[32768]{0}', space=vmem, size = 0x8000, scoped, tag = 'input window, operand 5, single buffered']
    #allocation7 [shape = 's32[1]{0}', space=sflag, size = 0x4, scoped, tag = 'scoped memory for tpu_custom_call.1']
    %16 = vsyncpa [#allocation5], 0
    %17 = vsyncpa [#allocation7], 0
    // Predicated region
    $region2: #{tpu_custom_call.1} parent=1 // pred_check
      _
    $region3: #{tpu_custom_call.1} parent=1 // pred_check_branch
      %19 = sbr.rel (0) target = $region5
    $region4: #{tpu_custom_call.1} parent=1 // pred_region
      _
    $region5: #{tpu_custom_call.1} parent=1 // pred_fallthru
      _
    // Predicated region
    $region6: #{tpu_custom_call.1} parent=1 // pred_check
      _
    $region7: #{tpu_custom_call.1} parent=1 // pred_check_branch
      %21 = sbr.rel (0) target = $region9
    $region8: #{tpu_custom_call.1} parent=1 // pred_region
      _
    $region9: #{tpu_custom_call.1} parent=1 // pred_fallthru
      _
    // Predicated region
    $region10: #{tpu_custom_call.1} parent=1 // pred_check
      _
    $region11: #{tpu_custom_call.1} parent=1 // pred_check_branch
      %23 = sbr.rel (0) target = $region13
    $region12: #{tpu_custom_call.1} parent=1 // pred_region
      _
    $region13: #{tpu_custom_call.1} parent=1 // pred_fallthru
      _
    // Predicated region
    $region14: #{tpu_custom_call.1} parent=1 // pred_check
      _
    $region15: #{tpu_custom_call.1} parent=1 // pred_check_branch
      %25 = sbr.rel (0) target = $region17
    $region16: #{tpu_custom_call.1} parent=1 // pred_region
      _
    $region17: #{tpu_custom_call.1} parent=1 // pred_fallthru
      _
    // Predicated region
    $region18: #{tpu_custom_call.1} parent=1 // pred_check
      _
    $region19: #{tpu_custom_call.1} parent=1 // pred_check_branch
      %27 = sbr.rel (0) target = $region21
    $region20: #{tpu_custom_call.1} parent=1 // pred_region
      %s29 = ssub.s32 1024, 1024
      %30 = vsyncadd [#allocation5], %s29
      %s31 = sshll.u32 [#allocation4], 4
      %s32 = int_to_ptr.vmem [resolvable:$true] %s31
      %37 = dma.hbm_to_vmem [thread:$0]  %s4, 1024, %s32, [#allocation5], 128, 128, 8
    $region21: #{tpu_custom_call.1} parent=1 // pred_fallthru
      _
    // Predicated region
    $region22: #{tpu_custom_call.1} parent=1 // pred_check
      _
    $region23: #{tpu_custom_call.1} parent=1 // pred_check_branch
      %39 = sbr.rel (0) target = $region25
    $region24: #{tpu_custom_call.1} parent=1 // pred_region
      %s41 = ssub.s32 1024, 1024
      %42 = vsyncadd [#allocation7], %s41
      %s43 = sshll.u32 [#allocation6], 4
      %s44 = int_to_ptr.vmem [resolvable:$true] %s43
      %49 = dma.hbm_to_vmem [thread:$0]  %s5, 1024, %s44, [#allocation7], 128, 128, 8
    $region25: #{tpu_custom_call.1} parent=1 // pred_fallthru
      _
    // Predicated region
    $region26: #{tpu_custom_call.1} parent=1 // pred_check
      _
    $region27: #{tpu_custom_call.1} parent=1 // pred_check_branch
      %51 = sbr.rel (0) target = $region29
    $region28: #{tpu_custom_call.1} parent=1 // pred_region
      _
    $region29: #{tpu_custom_call.1} parent=1 // pred_fallthru
      _
    // Predicated region
    $region30: #{tpu_custom_call.1} parent=1 // pred_check
      _
    $region31: #{tpu_custom_call.1} parent=1 // pred_check_branch
      %53 = sbr.rel (0) target = $region33
    $region32: #{tpu_custom_call.1} parent=1 // pred_region
      _
    $region33: #{tpu_custom_call.1} parent=1 // pred_fallthru
      _
    // Predicated region
    $region34: #{tpu_custom_call.1} parent=1 // pred_check
      _
    $region35: #{tpu_custom_call.1} parent=1 // pred_check_branch
      %55 = sbr.rel (0) target = $region37
    $region36: #{tpu_custom_call.1} parent=1 // pred_region
      _
    $region37: #{tpu_custom_call.1} parent=1 // pred_fallthru
      _
    // Predicated region
    $region38: #{tpu_custom_call.1} parent=1 // pred_check
      _
    $region39: #{tpu_custom_call.1} parent=1 // pred_check_branch
      %57 = sbr.rel (0) target = $region41
    $region40: #{tpu_custom_call.1} parent=1 // pred_region
      %58 = dma.done [#allocation5], 1024
    $region41: #{tpu_custom_call.1} parent=1 // pred_fallthru
      _
    // Predicated region
    $region42: #{tpu_custom_call.1} parent=1 // pred_check
      _
    $region43: #{tpu_custom_call.1} parent=1 // pred_check_branch
      %60 = sbr.rel (0) target = $region45
    $region44: #{tpu_custom_call.1} parent=1 // pred_region
      %61 = dma.done [#allocation7], 1024
    $region45: #{tpu_custom_call.1} parent=1 // pred_fallthru
      _
    %v63 = vld [vmem:[%s1] sm:$0x77]
    %v64 = vld [vmem:[#allocation4] sm:$0xff]
    %v65 = vld [vmem:[#allocation4 + $0x8] sm:$0xff]
    %v66 = vld [vmem:[#allocation4 + $0x10] sm:$0xff]
    %v67 = vld [vmem:[#allocation4 + $0x18] sm:$0xff]
    %v68 = vld [vmem:[#allocation4 + $0x20] sm:$0xff]
    %v69 = vld [vmem:[#allocation4 + $0x28] sm:$0xff]
    %v70 = vld [vmem:[#allocation4 + $0x30] sm:$0xff]
    %v71 = vld [vmem:[#allocation4 + $0x38] sm:$0xff]
    %v72 = vld [vmem:[%s2] sm:$0xff]
    %v73 = vld [vmem:[%s2 + $0x8] sm:$0xff]
    %v74 = vld [vmem:[%s2 + $0x10] sm:$0xff]
    %v75 = vld [vmem:[%s2 + $0x18] sm:$0xff]
    %v76 = vld [vmem:[%s2 + $0x20] sm:$0xff]
    %v77 = vld [vmem:[%s2 + $0x28] sm:$0xff]
    %v78 = vld [vmem:[%s2 + $0x30] sm:$0xff]
    %v79 = vld [vmem:[%s2 + $0x38] sm:$0xff]
    %v80 = vld [vmem:[#allocation6] sm:$0xff]
    %v81 = vld [vmem:[#allocation6 + $0x8] sm:$0xff]
    %v82 = vld [vmem:[#allocation6 + $0x10] sm:$0xff]
    %v83 = vld [vmem:[#allocation6 + $0x18] sm:$0xff]
    %v84 = vld [vmem:[#allocation6 + $0x20] sm:$0xff]
    %v85 = vld [vmem:[#allocation6 + $0x28] sm:$0xff]
    %v86 = vld [vmem:[#allocation6 + $0x30] sm:$0xff]
    %v87 = vld [vmem:[#allocation6 + $0x38] sm:$0xff]
    %v88 = vld [vmem:[%s3] sm:$0x3]
    %v89 = vld [vmem:[%s6] sm:$0x3]
    %v90 = vld [vmem:[%s0] sm:$0xf]
    %v91 = vld [vmem:[%s0 + $0x4] sm:$0xf]
    %v93 = vlaneseq
    %v94 = vshrl.u32 %v93, 7
    %v95 = vsub.s32 0, %v94
    %v96 = vrot.slane %v88, %v95
    %v97 = vlaneseq
    %v98 = vshrl.u32 %v97, 7
    %v99 = vsub.s32 1, %v98
    %v100 = vrot.slane %v88, %v99
    %v105 = vunpack.c.l.b16 %v90
    %v106 = vunpack.c.l.b16 %v91
    %v107 = vpack.c.b16 %v106, %v105
    %v109 = vunpack.c.l.b16 %v63
    %v110 = vunpack.c.h.b16 %v63
    %v111 = vpack.c.b16 %v109, %v109
    %v112 = vpack.c.b16 %v110, %v110
    %vm113 = vcmask 48128
    %v115 = vsel %vm113, %v107, 0
    %vm117 = vcmask 1042432
    %v119 = vsel %vm117, %v111, 0
    %v122 = vsel %vm117, %v112, 0
    %124 = vmatprep.subr.bf16.mxu0 0
    %125 = vmatpush1.bf16.msra.mxu0 0
    %126 = vmatprep.subr.bf16.mxu0 0
    %127 = vmatpush1.bf16.msra.mxu0 0
    %128 = vmatprep.subr.bf16.mxu0 0
    %129 = vmatpush1.bf16.msra.mxu0 0
    %130 = vmatprep.subr.bf16.mxu0 0
    %131 = vmatpush1.bf16.msra.mxu0 0
    %132 = vmatprep.subr.bf16.mxu0 0
    %133 = vmatpush1.bf16.msra.mxu0 0
    %134 = vmatprep.subr.bf16.mxu0 0
    %135 = vmatpush1.bf16.msra.mxu0 0
    %136 = vmatprep.subr.bf16.mxu0 0
    %137 = vmatpush1.bf16.msra.mxu0 0
    %138 = vmatprep.subr.bf16.mxu0 %v122
    %139 = vmatpush1.bf16.msra.mxu0 %v119
    %140 = vmatprep.subr.bf16.mxu0 0
    %141 = vmatpush2.bf16.msra.mxu0 0
    %142 = vmatprep.subr.bf16.mxu0 0
    %143 = vmatpush2.bf16.msra.mxu0 0
    %144 = vmatprep.subr.bf16.mxu0 0
    %145 = vmatpush2.bf16.msra.mxu0 0
    %146 = vmatprep.subr.bf16.mxu0 0
    %147 = vmatpush2.bf16.msra.mxu0 0
    %148 = vmatprep.subr.bf16.mxu0 0
    %149 = vmatpush2.bf16.msra.mxu0 0
    %150 = vmatprep.subr.bf16.mxu0 0
    %151 = vmatpush2.bf16.msra.mxu0 0
    %152 = vmatprep.subr.bf16.mxu0 0
    %153 = vmatpush2.bf16.msra.mxu0 0
    %154 = vmatprep.subr.bf16.mxu0 0
    %155 = vmatpush2.bf16.msra.mxu0 0
    %156 = vmatprep.mubr.bf16.mxu0 0
    %157 = vmatmul.mubr.bf16.gmra.mxu0 %v115
    %v158 = vpop.f32.mrf.mxu0
    %v159 = vadd.f32 %v96, %v158
    %v160 = vpop.f32.mrf.mxu0
    %v161 = vadd.f32 %v100, %v160
    %v162 = vpop.f32.mrf.mxu0
    %v163 = vadd.f32 %v96, %v162
    %v164 = vpop.f32.mrf.mxu0
    %v165 = vadd.f32 %v100, %v164
    %166 = vdwg.mxu0
    %167 = vst [vmem:[#allocation2] sm:$0xff] %v159
    %168 = vst [vmem:[#allocation2 + $0x8] sm:$0xff] %v161
    %169 = vst [vmem:[#allocation2 + $0x10] sm:$0xff] %v163
    %170 = vst [vmem:[#allocation2 + $0x18] sm:$0xff] %v165
    %v179 = vunpack.c.l.b16 %v72
    %v180 = vunpack.c.h.b16 %v72
    %v181 = vunpack.c.l.b16 %v73
    %v182 = vunpack.c.h.b16 %v73
    %v183 = vunpack.c.l.b16 %v74
    %v184 = vunpack.c.h.b16 %v74
    %v185 = vunpack.c.l.b16 %v75
    %v186 = vunpack.c.h.b16 %v75
    %v187 = vunpack.c.l.b16 %v76
    %v188 = vunpack.c.h.b16 %v76
    %v189 = vunpack.c.l.b16 %v77
    %v190 = vunpack.c.h.b16 %v77
    %v191 = vunpack.c.l.b16 %v78
    %v192 = vunpack.c.h.b16 %v78
    %v193 = vunpack.c.l.b16 %v79
    %v194 = vunpack.c.h.b16 %v79
    %v195 = vpack.c.b16 %v181, %v179
    %v196 = vpack.c.b16 %v182, %v180
    %v197 = vpack.c.b16 %v185, %v183
    %v198 = vpack.c.b16 %v186, %v184
    %v199 = vpack.c.b16 %v189, %v187
    %v200 = vpack.c.b16 %v190, %v188
    %v201 = vpack.c.b16 %v193, %v191
    %v202 = vpack.c.b16 %v194, %v192
    %vm211 = vcmask 523264
    %v213 = vsel %vm211, 0, 0
    %215 = vmatprep.subr.bf16.mxu0 0
    %216 = vmatpush1.bf16.msra.mxu0 0
    %217 = vmatprep.subr.bf16.mxu0 0
    %218 = vmatpush1.bf16.msra.mxu0 0
    %219 = vmatprep.subr.bf16.mxu0 0
    %220 = vmatpush1.bf16.msra.mxu0 0
    %221 = vmatprep.subr.bf16.mxu0 0
    %222 = vmatpush1.bf16.msra.mxu0 0
    %223 = vmatprep.subr.bf16.mxu0 %v202
    %224 = vmatpush1.bf16.msra.mxu0 %v201
    %225 = vmatprep.subr.bf16.mxu0 %v200
    %226 = vmatpush1.bf16.msra.mxu0 %v199
    %227 = vmatprep.subr.bf16.mxu0 %v198
    %228 = vmatpush1.bf16.msra.mxu0 %v197
    %229 = vmatprep.subr.bf16.mxu0 %v196
    %230 = vmatpush1.bf16.msra.mxu0 %v195
    %231 = vmatprep.subr.bf16.mxu0 0
    %232 = vmatpush2.bf16.msra.mxu0 0
    %233 = vmatprep.subr.bf16.mxu0 0
    %234 = vmatpush2.bf16.msra.mxu0 0
    %235 = vmatprep.subr.bf16.mxu0 0
    %236 = vmatpush2.bf16.msra.mxu0 0
    %237 = vmatprep.subr.bf16.mxu0 0
    %238 = vmatpush2.bf16.msra.mxu0 0
    %239 = vmatprep.subr.bf16.mxu0 0
    %240 = vmatpush2.bf16.msra.mxu0 0
    %241 = vmatprep.subr.bf16.mxu0 0
    %242 = vmatpush2.bf16.msra.mxu0 0
    %243 = vmatprep.subr.bf16.mxu0 0
    %244 = vmatpush2.bf16.msra.mxu0 0
    %245 = vmatprep.subr.bf16.mxu0 0
    %246 = vmatpush2.bf16.msra.mxu0 0
    %247 = vmatprep.mubr.bf16.mxu0 0
    %248 = vmatmul.mubr.bf16.gmra.mxu0 %v213
    %v249 = vpop.f32.mrf.mxu0
    %v250 = vadd.f32 0.0, %v249
    %v251 = vpop.f32.mrf.mxu0
    %v252 = vadd.f32 0.0, %v251
    %v253 = vpop.f32.mrf.mxu0
    %v254 = vpop.f32.mrf.mxu0
    %255 = vdwg.mxu0
    %v256 = vld [vmem:[#allocation2] sm:$0x3]
    %v257 = vld [vmem:[#allocation2 + $0x8] sm:$0x3]
    %v258 = vadd.f32 %v256, %v250
    %v259 = vadd.f32 %v257, %v252
    %v260 = vxor.u32 %v258, 2147483648
    %v261 = vmul.f32 %v260, 1.442695
    %v262 = vpow.pop %v261
    %v263 = vadd.f32 %v262, 1.0
    %v264 = vrcp.pop %v263
    %v265 = vmul.f32 1.0, %v264
    %v266 = vtanh.pop %v259
    %v267 = vxor.u32 %v259, 2147483648
    %v268 = vmul.f32 %v267, 1.442695
    %v269 = vpow.pop %v268
    %v270 = vadd.f32 %v269, 1.0
    %v271 = vrcp.pop %v270
    %v272 = vmul.f32 1.0, %v271
    %v273 = vmul.f32 %v265, 0.0
    %v274 = vmul.f32 %v265, %v266
    %276 = vrot.lane.b32.xlu0 %v274, 64
    %v277 = vpop.permute.xlu0 %276
    %v279 = vadd.f32 %v273, %v277
    %v280 = vtanh.pop %v279
    %v281 = vmul.f32 %v272, %v280
    %v282 = vpack.c.bf16 %v281, %v281
    %284 = vrot.lane.b32.xlu0 %v282, 64
    %v285 = vpop.permute.xlu0 %284
    %v287 = vsel %vm211, %v285, 0
    %289 = vmatprep.subr.bf16.mxu0 0
    %290 = vmatpush1.bf16.msra.mxu0 0
    %291 = vmatprep.subr.bf16.mxu0 0
    %292 = vmatpush1.bf16.msra.mxu0 0
    %293 = vmatprep.subr.bf16.mxu0 0
    %294 = vmatpush1.bf16.msra.mxu0 0
    %295 = vmatprep.subr.bf16.mxu0 0
    %296 = vmatpush1.bf16.msra.mxu0 0
    %297 = vmatprep.subr.bf16.mxu0 %v202
    %298 = vmatpush1.bf16.msra.mxu0 %v201
    %299 = vmatprep.subr.bf16.mxu0 %v200
    %300 = vmatpush1.bf16.msra.mxu0 %v199
    %301 = vmatprep.subr.bf16.mxu0 %v198
    %302 = vmatpush1.bf16.msra.mxu0 %v197
    %303 = vmatprep.subr.bf16.mxu0 %v196
    %304 = vmatpush1.bf16.msra.mxu0 %v195
    %305 = vmatprep.subr.bf16.mxu0 0
    %306 = vmatpush2.bf16.msra.mxu0 0
    %307 = vmatprep.subr.bf16.mxu0 0
    %308 = vmatpush2.bf16.msra.mxu0 0
    %309 = vmatprep.subr.bf16.mxu0 0
    %310 = vmatpush2.bf16.msra.mxu0 0
    %311 = vmatprep.subr.bf16.mxu0 0
    %312 = vmatpush2.bf16.msra.mxu0 0
    %313 = vmatprep.subr.bf16.mxu0 0
    %314 = vmatpush2.bf16.msra.mxu0 0
    %315 = vmatprep.subr.bf16.mxu0 0
    %316 = vmatpush2.bf16.msra.mxu0 0
    %317 = vmatprep.subr.bf16.mxu0 0
    %318 = vmatpush2.bf16.msra.mxu0 0
    %319 = vmatprep.subr.bf16.mxu0 0
    %320 = vmatpush2.bf16.msra.mxu0 0
    %321 = vmatprep.mubr.bf16.mxu0 0
    %322 = vmatmul.mubr.bf16.gmra.mxu0 %v287
    %v323 = vpop.f32.mrf.mxu0
    %v324 = vadd.f32 0.0, %v323
    %v325 = vpop.f32.mrf.mxu0
    %v326 = vadd.f32 0.0, %v325
    %v327 = vpop.f32.mrf.mxu0
    %v328 = vpop.f32.mrf.mxu0
    %329 = vdwg.mxu0
    %v330 = vld [vmem:[#allocation2] sm:$0xc]
    %v331 = vld [vmem:[#allocation2 + $0x8] sm:$0xc]
    %v334 = vrot.slane %v324, 6
    %v335 = vrot.slane %v326, 6
    %v338 = vadd.f32 %v330, %v334
    %v339 = vadd.f32 %v331, %v335
    %v340 = vxor.u32 %v338, 2147483648
    %v341 = vmul.f32 %v340, 1.442695
    %v342 = vpow.pop %v341
    %v343 = vadd.f32 %v342, 1.0
    %v344 = vrcp.pop %v343
    %v345 = vmul.f32 1.0, %v344
    %v346 = vtanh.pop %v339
    %v347 = vxor.u32 %v339, 2147483648
    %v348 = vmul.f32 %v347, 1.442695
    %v349 = vpow.pop %v348
    %v350 = vadd.f32 %v349, 1.0
    %v351 = vrcp.pop %v350
    %v352 = vmul.f32 1.0, %v351
    %v354 = vrot.slane %v279, 6
    %v356 = vmul.f32 %v345, %v354
    %v357 = vmul.f32 %v345, %v346
    %359 = vrot.lane.b32.xlu0 %v357, 64
    %v360 = vpop.permute.xlu0 %359
    %v362 = vadd.f32 %v356, %v360
    %v363 = vtanh.pop %v362
    %v364 = vmul.f32 %v352, %v363
    %v373 = vunpack.c.l.b16 %v80
    %v374 = vunpack.c.h.b16 %v80
    %v375 = vunpack.c.l.b16 %v81
    %v376 = vunpack.c.h.b16 %v81
    %v377 = vunpack.c.l.b16 %v82
    %v378 = vunpack.c.h.b16 %v82
    %v379 = vunpack.c.l.b16 %v83
    %v380 = vunpack.c.h.b16 %v83
    %v381 = vunpack.c.l.b16 %v84
    %v382 = vunpack.c.h.b16 %v84
    %v383 = vunpack.c.l.b16 %v85
    %v384 = vunpack.c.h.b16 %v85
    %v385 = vunpack.c.l.b16 %v86
    %v386 = vunpack.c.h.b16 %v86
    %v387 = vunpack.c.l.b16 %v87
    %v388 = vunpack.c.h.b16 %v87
    %v389 = vpack.c.b16 %v375, %v373
    %v390 = vpack.c.b16 %v376, %v374
    %v391 = vpack.c.b16 %v379, %v377
    %v392 = vpack.c.b16 %v380, %v378
    %v393 = vpack.c.b16 %v383, %v381
    %v394 = vpack.c.b16 %v384, %v382
    %v395 = vpack.c.b16 %v387, %v385
    %v396 = vpack.c.b16 %v388, %v386
    %405 = vmatprep.subr.bf16.mxu0 0
    %406 = vmatpush1.bf16.msra.mxu0 0
    %407 = vmatprep.subr.bf16.mxu0 0
    %408 = vmatpush1.bf16.msra.mxu0 0
    %409 = vmatprep.subr.bf16.mxu0 0
    %410 = vmatpush1.bf16.msra.mxu0 0
    %411 = vmatprep.subr.bf16.mxu0 0
    %412 = vmatpush1.bf16.msra.mxu0 0
    %413 = vmatprep.subr.bf16.mxu0 %v396
    %414 = vmatpush1.bf16.msra.mxu0 %v395
    %415 = vmatprep.subr.bf16.mxu0 %v394
    %416 = vmatpush1.bf16.msra.mxu0 %v393
    %417 = vmatprep.subr.bf16.mxu0 %v392
    %418 = vmatpush1.bf16.msra.mxu0 %v391
    %419 = vmatprep.subr.bf16.mxu0 %v390
    %420 = vmatpush1.bf16.msra.mxu0 %v389
    %421 = vmatprep.subr.bf16.mxu0 0
    %422 = vmatpush2.bf16.msra.mxu0 0
    %423 = vmatprep.subr.bf16.mxu0 0
    %424 = vmatpush2.bf16.msra.mxu0 0
    %425 = vmatprep.subr.bf16.mxu0 0
    %426 = vmatpush2.bf16.msra.mxu0 0
    %427 = vmatprep.subr.bf16.mxu0 0
    %428 = vmatpush2.bf16.msra.mxu0 0
    %429 = vmatprep.subr.bf16.mxu0 0
    %430 = vmatpush2.bf16.msra.mxu0 0
    %431 = vmatprep.subr.bf16.mxu0 0
    %432 = vmatpush2.bf16.msra.mxu0 0
    %433 = vmatprep.subr.bf16.mxu0 0
    %434 = vmatpush2.bf16.msra.mxu0 0
    %435 = vmatprep.subr.bf16.mxu0 0
    %436 = vmatpush2.bf16.msra.mxu0 0
    %437 = vmatprep.mubr.bf16.mxu0 0
    %438 = vmatmul.mubr.bf16.gmra.mxu0 %v213
    %v439 = vpop.f32.mrf.mxu0
    %v440 = vadd.f32 0.0, %v439
    %v441 = vpop.f32.mrf.mxu0
    %v442 = vadd.f32 0.0, %v441
    %v443 = vpop.f32.mrf.mxu0
    %v444 = vpop.f32.mrf.mxu0
    %445 = vdwg.mxu0
    %v447 = vlaneseq
    %v448 = vshrl.u32 %v447, 7
    %v449 = vsub.s32 0, %v448
    %v450 = vrot.slane %v89, %v449
    %v451 = vlaneseq
    %v452 = vshrl.u32 %v451, 7
    %v453 = vsub.s32 1, %v452
    %v454 = vrot.slane %v89, %v453
    %v465 = vunpack.c.l.b16 %v64
    %v466 = vunpack.c.h.b16 %v64
    %v467 = vunpack.c.l.b16 %v65
    %v468 = vunpack.c.h.b16 %v65
    %v469 = vunpack.c.l.b16 %v66
    %v470 = vunpack.c.h.b16 %v66
    %v471 = vunpack.c.l.b16 %v67
    %v472 = vunpack.c.h.b16 %v67
    %v473 = vunpack.c.l.b16 %v68
    %v474 = vunpack.c.h.b16 %v68
    %v475 = vunpack.c.l.b16 %v69
    %v476 = vunpack.c.h.b16 %v69
    %v477 = vunpack.c.l.b16 %v70
    %v478 = vunpack.c.h.b16 %v70
    %v479 = vunpack.c.l.b16 %v71
    %v480 = vunpack.c.h.b16 %v71
    %v481 = vpack.c.b16 %v467, %v465
    %v482 = vpack.c.b16 %v468, %v466
    %v483 = vpack.c.b16 %v471, %v469
    %v484 = vpack.c.b16 %v472, %v470
    %v485 = vpack.c.b16 %v475, %v473
    %v486 = vpack.c.b16 %v476, %v474
    %v487 = vpack.c.b16 %v479, %v477
    %v488 = vpack.c.b16 %v480, %v478
    %497 = vmatprep.subr.bf16.mxu0 0
    %498 = vmatpush1.bf16.msra.mxu0 0
    %499 = vmatprep.subr.bf16.mxu0 0
    %500 = vmatpush1.bf16.msra.mxu0 0
    %501 = vmatprep.subr.bf16.mxu0 0
    %502 = vmatpush1.bf16.msra.mxu0 0
    %503 = vmatprep.subr.bf16.mxu0 0
    %504 = vmatpush1.bf16.msra.mxu0 0
    %505 = vmatprep.subr.bf16.mxu0 %v488
    %506 = vmatpush1.bf16.msra.mxu0 %v487
    %507 = vmatprep.subr.bf16.mxu0 %v486
    %508 = vmatpush1.bf16.msra.mxu0 %v485
    %509 = vmatprep.subr.bf16.mxu0 %v484
    %510 = vmatpush1.bf16.msra.mxu0 %v483
    %511 = vmatprep.subr.bf16.mxu0 %v482
    %512 = vmatpush1.bf16.msra.mxu0 %v481
    %513 = vmatprep.subr.bf16.mxu0 0
    %514 = vmatpush2.bf16.msra.mxu0 0
    %515 = vmatprep.subr.bf16.mxu0 0
    %516 = vmatpush2.bf16.msra.mxu0 0
    %517 = vmatprep.subr.bf16.mxu0 0
    %518 = vmatpush2.bf16.msra.mxu0 0
    %519 = vmatprep.subr.bf16.mxu0 0
    %520 = vmatpush2.bf16.msra.mxu0 0
    %521 = vmatprep.subr.bf16.mxu0 0
    %522 = vmatpush2.bf16.msra.mxu0 0
    %523 = vmatprep.subr.bf16.mxu0 0
    %524 = vmatpush2.bf16.msra.mxu0 0
    %525 = vmatprep.subr.bf16.mxu0 0
    %526 = vmatpush2.bf16.msra.mxu0 0
    %527 = vmatprep.subr.bf16.mxu0 0
    %528 = vmatpush2.bf16.msra.mxu0 0
    %529 = vmatprep.mubr.bf16.mxu0 0
    %530 = vmatmul.mubr.bf16.gmra.mxu0 %v287
    %v531 = vpop.f32.mrf.mxu0
    %v532 = vadd.f32 %v450, %v531
    %v533 = vpop.f32.mrf.mxu0
    %v534 = vadd.f32 %v454, %v533
    %v535 = vpop.f32.mrf.mxu0
    %v536 = vpop.f32.mrf.mxu0
    %537 = vdwg.mxu0
    %v538 = vadd.f32 %v532, %v440
    %v539 = vadd.f32 %v534, %v442
    %v540 = vxor.u32 %v538, 2147483648
    %v541 = vmul.f32 %v540, 1.442695
    %v542 = vpow.pop %v541
    %v543 = vadd.f32 %v542, 1.0
    %v544 = vrcp.pop %v543
    %v545 = vmul.f32 1.0, %v544
    %v546 = vtanh.pop %v539
    %v547 = vxor.u32 %v539, 2147483648
    %v548 = vmul.f32 %v547, 1.442695
    %v549 = vpow.pop %v548
    %v550 = vadd.f32 %v549, 1.0
    %v551 = vrcp.pop %v550
    %v552 = vmul.f32 1.0, %v551
    %v553 = vmul.f32 %v545, 0.0
    %v554 = vmul.f32 %v545, %v546
    %556 = vrot.lane.b32.xlu0 %v554, 64
    %v557 = vpop.permute.xlu0 %556
    %v559 = vadd.f32 %v553, %v557
    %v560 = vtanh.pop %v559
    %v561 = vmul.f32 %v552, %v560
    %v562 = vpack.c.bf16 %v364, %v364
    %v564 = vrot.slane %v562, 1
    %565 = vrot.lane.b32.xlu0 %v564, 64
    %v566 = vpop.permute.xlu0 %565
    %v568 = vsel %vm211, %v566, 0
    %570 = vmatprep.subr.bf16.mxu0 0
    %571 = vmatpush1.bf16.msra.mxu0 0
    %572 = vmatprep.subr.bf16.mxu0 0
    %573 = vmatpush1.bf16.msra.mxu0 0
    %574 = vmatprep.subr.bf16.mxu0 0
    %575 = vmatpush1.bf16.msra.mxu0 0
    %576 = vmatprep.subr.bf16.mxu0 0
    %577 = vmatpush1.bf16.msra.mxu0 0
    %578 = vmatprep.subr.bf16.mxu0 %v202
    %579 = vmatpush1.bf16.msra.mxu0 %v201
    %580 = vmatprep.subr.bf16.mxu0 %v200
    %581 = vmatpush1.bf16.msra.mxu0 %v199
    %582 = vmatprep.subr.bf16.mxu0 %v198
    %583 = vmatpush1.bf16.msra.mxu0 %v197
    %584 = vmatprep.subr.bf16.mxu0 %v196
    %585 = vmatpush1.bf16.msra.mxu0 %v195
    %586 = vmatprep.subr.bf16.mxu0 0
    %587 = vmatpush2.bf16.msra.mxu0 0
    %588 = vmatprep.subr.bf16.mxu0 0
    %589 = vmatpush2.bf16.msra.mxu0 0
    %590 = vmatprep.subr.bf16.mxu0 0
    %591 = vmatpush2.bf16.msra.mxu0 0
    %592 = vmatprep.subr.bf16.mxu0 0
    %593 = vmatpush2.bf16.msra.mxu0 0
    %594 = vmatprep.subr.bf16.mxu0 0
    %595 = vmatpush2.bf16.msra.mxu0 0
    %596 = vmatprep.subr.bf16.mxu0 0
    %597 = vmatpush2.bf16.msra.mxu0 0
    %598 = vmatprep.subr.bf16.mxu0 0
    %599 = vmatpush2.bf16.msra.mxu0 0
    %600 = vmatprep.subr.bf16.mxu0 0
    %601 = vmatpush2.bf16.msra.mxu0 0
    %602 = vmatprep.mubr.bf16.mxu0 0
    %603 = vmatmul.mubr.bf16.gmra.mxu0 %v568
    %v604 = vpop.f32.mrf.mxu0
    %v605 = vadd.f32 0.0, %v604
    %v606 = vpop.f32.mrf.mxu0
    %v607 = vadd.f32 0.0, %v606
    %v608 = vpop.f32.mrf.mxu0
    %v609 = vpop.f32.mrf.mxu0
    %610 = vdwg.mxu0
    %v611 = vld [vmem:[#allocation2] sm:$0x30]
    %v612 = vld [vmem:[#allocation2 + $0x8] sm:$0x30]
    %v615 = vrot.slane %v605, 4
    %v616 = vrot.slane %v607, 4
    %v619 = vadd.f32 %v611, %v615
    %v620 = vadd.f32 %v612, %v616
    %v621 = vxor.u32 %v619, 2147483648
    %v622 = vmul.f32 %v621, 1.442695
    %v623 = vpow.pop %v622
    %v624 = vadd.f32 %v623, 1.0
    %v625 = vrcp.pop %v624
    %v626 = vmul.f32 1.0, %v625
    %v627 = vtanh.pop %v620
    %v628 = vxor.u32 %v620, 2147483648
    %v629 = vmul.f32 %v628, 1.442695
    %v630 = vpow.pop %v629
    %v631 = vadd.f32 %v630, 1.0
    %v632 = vrcp.pop %v631
    %v633 = vmul.f32 1.0, %v632
    %v635 = vrot.slane %v362, 6
    %v637 = vmul.f32 %v626, %v635
    %v638 = vmul.f32 %v626, %v627
    %640 = vrot.lane.b32.xlu0 %v638, 64
    %v641 = vpop.permute.xlu0 %640
    %v643 = vadd.f32 %v637, %v641
    %v644 = vtanh.pop %v643
    %v645 = vmul.f32 %v633, %v644
    %v646 = vpack.c.bf16 %v561, %v561
    %648 = vrot.lane.b32.xlu0 %v646, 64
    %v649 = vpop.permute.xlu0 %648
    %v651 = vsel %vm211, %v649, 0
    %653 = vmatprep.subr.bf16.mxu0 0
    %654 = vmatpush1.bf16.msra.mxu0 0
    %655 = vmatprep.subr.bf16.mxu0 0
    %656 = vmatpush1.bf16.msra.mxu0 0
    %657 = vmatprep.subr.bf16.mxu0 0
    %658 = vmatpush1.bf16.msra.mxu0 0
    %659 = vmatprep.subr.bf16.mxu0 0
    %660 = vmatpush1.bf16.msra.mxu0 0
    %661 = vmatprep.subr.bf16.mxu0 %v396
    %662 = vmatpush1.bf16.msra.mxu0 %v395
    %663 = vmatprep.subr.bf16.mxu0 %v394
    %664 = vmatpush1.bf16.msra.mxu0 %v393
    %665 = vmatprep.subr.bf16.mxu0 %v392
    %666 = vmatpush1.bf16.msra.mxu0 %v391
    %667 = vmatprep.subr.bf16.mxu0 %v390
    %668 = vmatpush1.bf16.msra.mxu0 %v389
    %669 = vmatprep.subr.bf16.mxu0 0
    %670 = vmatpush2.bf16.msra.mxu0 0
    %671 = vmatprep.subr.bf16.mxu0 0
    %672 = vmatpush2.bf16.msra.mxu0 0
    %673 = vmatprep.subr.bf16.mxu0 0
    %674 = vmatpush2.bf16.msra.mxu0 0
    %675 = vmatprep.subr.bf16.mxu0 0
    %676 = vmatpush2.bf16.msra.mxu0 0
    %677 = vmatprep.subr.bf16.mxu0 0
    %678 = vmatpush2.bf16.msra.mxu0 0
    %679 = vmatprep.subr.bf16.mxu0 0
    %680 = vmatpush2.bf16.msra.mxu0 0
    %681 = vmatprep.subr.bf16.mxu0 0
    %682 = vmatpush2.bf16.msra.mxu0 0
    %683 = vmatprep.subr.bf16.mxu0 0
    %684 = vmatpush2.bf16.msra.mxu0 0
    %685 = vmatprep.mubr.bf16.mxu0 0
    %686 = vmatmul.mubr.bf16.gmra.mxu0 %v651
    %v687 = vpop.f32.mrf.mxu0
    %v688 = vadd.f32 0.0, %v687
    %v689 = vpop.f32.mrf.mxu0
    %v690 = vadd.f32 0.0, %v689
    %v691 = vpop.f32.mrf.mxu0
    %v692 = vpop.f32.mrf.mxu0
    %693 = vdwg.mxu0
    %694 = vmatprep.subr.bf16.mxu0 0
    %695 = vmatpush1.bf16.msra.mxu0 0
    %696 = vmatprep.subr.bf16.mxu0 0
    %697 = vmatpush1.bf16.msra.mxu0 0
    %698 = vmatprep.subr.bf16.mxu0 0
    %699 = vmatpush1.bf16.msra.mxu0 0
    %700 = vmatprep.subr.bf16.mxu0 0
    %701 = vmatpush1.bf16.msra.mxu0 0
    %702 = vmatprep.subr.bf16.mxu0 %v488
    %703 = vmatpush1.bf16.msra.mxu0 %v487
    %704 = vmatprep.subr.bf16.mxu0 %v486
    %705 = vmatpush1.bf16.msra.mxu0 %v485
    %706 = vmatprep.subr.bf16.mxu0 %v484
    %707 = vmatpush1.bf16.msra.mxu0 %v483
    %708 = vmatprep.subr.bf16.mxu0 %v482
    %709 = vmatpush1.bf16.msra.mxu0 %v481
    %710 = vmatprep.subr.bf16.mxu0 0
    %711 = vmatpush2.bf16.msra.mxu0 0
    %712 = vmatprep.subr.bf16.mxu0 0
    %713 = vmatpush2.bf16.msra.mxu0 0
    %714 = vmatprep.subr.bf16.mxu0 0
    %715 = vmatpush2.bf16.msra.mxu0 0
    %716 = vmatprep.subr.bf16.mxu0 0
    %717 = vmatpush2.bf16.msra.mxu0 0
    %718 = vmatprep.subr.bf16.mxu0 0
    %719 = vmatpush2.bf16.msra.mxu0 0
    %720 = vmatprep.subr.bf16.mxu0 0
    %721 = vmatpush2.bf16.msra.mxu0 0
    %722 = vmatprep.subr.bf16.mxu0 0
    %723 = vmatpush2.bf16.msra.mxu0 0
    %724 = vmatprep.subr.bf16.mxu0 0
    %725 = vmatpush2.bf16.msra.mxu0 0
    %726 = vmatprep.mubr.bf16.mxu0 0
    %727 = vmatmul.mubr.bf16.gmra.mxu0 %v568
    %v728 = vpop.f32.mrf.mxu0
    %v729 = vadd.f32 %v450, %v728
    %v730 = vpop.f32.mrf.mxu0
    %v731 = vadd.f32 %v454, %v730
    %v732 = vpop.f32.mrf.mxu0
    %v733 = vpop.f32.mrf.mxu0
    %734 = vdwg.mxu0
    %v735 = vadd.f32 %v729, %v688
    %v736 = vadd.f32 %v731, %v690
    %v737 = vxor.u32 %v735, 2147483648
    %v738 = vmul.f32 %v737, 1.442695
    %v739 = vpow.pop %v738
    %v740 = vadd.f32 %v739, 1.0
    %v741 = vrcp.pop %v740
    %v742 = vmul.f32 1.0, %v741
    %v743 = vtanh.pop %v736
    %v744 = vxor.u32 %v736, 2147483648
    %v745 = vmul.f32 %v744, 1.442695
    %v746 = vpow.pop %v745
    %v747 = vadd.f32 %v746, 1.0
    %v748 = vrcp.pop %v747
    %v749 = vmul.f32 1.0, %v748
    %v750 = vmul.f32 %v742, %v559
    %v751 = vmul.f32 %v742, %v743
    %753 = vrot.lane.b32.xlu0 %v751, 64
    %v754 = vpop.permute.xlu0 %753
    %v756 = vadd.f32 %v750, %v754
    %v757 = vtanh.pop %v756
    %v758 = vmul.f32 %v749, %v757
    %v759 = vpack.c.bf16 %v645, %v645
    %v761 = vrot.slane %v759, 2
    %762 = vrot.lane.b32.xlu0 %v761, 64
    %v763 = vpop.permute.xlu0 %762
    %v765 = vsel %vm211, %v763, 0
    %767 = vmatprep.subr.bf16.mxu0 0
    %768 = vmatpush1.bf16.msra.mxu0 0
    %769 = vmatprep.subr.bf16.mxu0 0
    %770 = vmatpush1.bf16.msra.mxu0 0
    %771 = vmatprep.subr.bf16.mxu0 0
    %772 = vmatpush1.bf16.msra.mxu0 0
    %773 = vmatprep.subr.bf16.mxu0 0
    %774 = vmatpush1.bf16.msra.mxu0 0
    %775 = vmatprep.subr.bf16.mxu0 %v202
    %776 = vmatpush1.bf16.msra.mxu0 %v201
    %777 = vmatprep.subr.bf16.mxu0 %v200
    %778 = vmatpush1.bf16.msra.mxu0 %v199
    %779 = vmatprep.subr.bf16.mxu0 %v198
    %780 = vmatpush1.bf16.msra.mxu0 %v197
    %781 = vmatprep.subr.bf16.mxu0 %v196
    %782 = vmatpush1.bf16.msra.mxu0 %v195
    %783 = vmatprep.subr.bf16.mxu0 0
    %784 = vmatpush2.bf16.msra.mxu0 0
    %785 = vmatprep.subr.bf16.mxu0 0
    %786 = vmatpush2.bf16.msra.mxu0 0
    %787 = vmatprep.subr.bf16.mxu0 0
    %788 = vmatpush2.bf16.msra.mxu0 0
    %789 = vmatprep.subr.bf16.mxu0 0
    %790 = vmatpush2.bf16.msra.mxu0 0
    %791 = vmatprep.subr.bf16.mxu0 0
    %792 = vmatpush2.bf16.msra.mxu0 0
    %793 = vmatprep.subr.bf16.mxu0 0
    %794 = vmatpush2.bf16.msra.mxu0 0
    %795 = vmatprep.subr.bf16.mxu0 0
    %796 = vmatpush2.bf16.msra.mxu0 0
    %797 = vmatprep.subr.bf16.mxu0 0
    %798 = vmatpush2.bf16.msra.mxu0 0
    %799 = vmatprep.mubr.bf16.mxu0 0
    %800 = vmatmul.mubr.bf16.gmra.mxu0 %v765
    %v801 = vpop.f32.mrf.mxu0
    %v802 = vadd.f32 0.0, %v801
    %v803 = vpop.f32.mrf.mxu0
    %v804 = vadd.f32 0.0, %v803
    %v805 = vpop.f32.mrf.mxu0
    %v806 = vpop.f32.mrf.mxu0
    %807 = vdwg.mxu0
    %v808 = vld [vmem:[#allocation2] sm:$0xc0]
    %v809 = vld [vmem:[#allocation2 + $0x8] sm:$0xc0]
    %v812 = vrot.slane %v802, 2
    %v813 = vrot.slane %v804, 2
    %v816 = vadd.f32 %v808, %v812
    %v817 = vadd.f32 %v809, %v813
    %v818 = vxor.u32 %v816, 2147483648
    %v819 = vmul.f32 %v818, 1.442695
    %v820 = vpow.pop %v819
    %v821 = vadd.f32 %v820, 1.0
    %v822 = vrcp.pop %v821
    %v823 = vmul.f32 1.0, %v822
    %v824 = vtanh.pop %v817
    %v825 = vxor.u32 %v817, 2147483648
    %v826 = vmul.f32 %v825, 1.442695
    %v827 = vpow.pop %v826
    %v828 = vadd.f32 %v827, 1.0
    %v829 = vrcp.pop %v828
    %v830 = vmul.f32 1.0, %v829
    %v832 = vrot.slane %v643, 6
    %v834 = vmul.f32 %v823, %v832
    %v835 = vmul.f32 %v823, %v824
    %837 = vrot.lane.b32.xlu0 %v835, 64
    %v838 = vpop.permute.xlu0 %837
    %v840 = vadd.f32 %v834, %v838
    %v841 = vtanh.pop %v840
    %v842 = vmul.f32 %v830, %v841
    %v843 = vpack.c.bf16 %v758, %v758
    %845 = vrot.lane.b32.xlu0 %v843, 64
    %v846 = vpop.permute.xlu0 %845
    %v848 = vsel %vm211, %v846, 0
    %850 = vmatprep.subr.bf16.mxu0 0
    %851 = vmatpush1.bf16.msra.mxu0 0
    %852 = vmatprep.subr.bf16.mxu0 0
    %853 = vmatpush1.bf16.msra.mxu0 0
    %854 = vmatprep.subr.bf16.mxu0 0
    %855 = vmatpush1.bf16.msra.mxu0 0
    %856 = vmatprep.subr.bf16.mxu0 0
    %857 = vmatpush1.bf16.msra.mxu0 0
    %858 = vmatprep.subr.bf16.mxu0 %v396
    %859 = vmatpush1.bf16.msra.mxu0 %v395
    %860 = vmatprep.subr.bf16.mxu0 %v394
    %861 = vmatpush1.bf16.msra.mxu0 %v393
    %862 = vmatprep.subr.bf16.mxu0 %v392
    %863 = vmatpush1.bf16.msra.mxu0 %v391
    %864 = vmatprep.subr.bf16.mxu0 %v390
    %865 = vmatpush1.bf16.msra.mxu0 %v389
    %866 = vmatprep.subr.bf16.mxu0 0
    %867 = vmatpush2.bf16.msra.mxu0 0
    %868 = vmatprep.subr.bf16.mxu0 0
    %869 = vmatpush2.bf16.msra.mxu0 0
    %870 = vmatprep.subr.bf16.mxu0 0
    %871 = vmatpush2.bf16.msra.mxu0 0
    %872 = vmatprep.subr.bf16.mxu0 0
    %873 = vmatpush2.bf16.msra.mxu0 0
    %874 = vmatprep.subr.bf16.mxu0 0
    %875 = vmatpush2.bf16.msra.mxu0 0
    %876 = vmatprep.subr.bf16.mxu0 0
    %877 = vmatpush2.bf16.msra.mxu0 0
    %878 = vmatprep.subr.bf16.mxu0 0
    %879 = vmatpush2.bf16.msra.mxu0 0
    %880 = vmatprep.subr.bf16.mxu0 0
    %881 = vmatpush2.bf16.msra.mxu0 0
    %882 = vmatprep.mubr.bf16.mxu0 0
    %883 = vmatmul.mubr.bf16.gmra.mxu0 %v848
    %v884 = vpop.f32.mrf.mxu0
    %v885 = vadd.f32 0.0, %v884
    %v886 = vpop.f32.mrf.mxu0
    %v887 = vadd.f32 0.0, %v886
    %v888 = vpop.f32.mrf.mxu0
    %v889 = vpop.f32.mrf.mxu0
    %890 = vdwg.mxu0
    %891 = vmatprep.subr.bf16.mxu0 0
    %892 = vmatpush1.bf16.msra.mxu0 0
    %893 = vmatprep.subr.bf16.mxu0 0
    %894 = vmatpush1.bf16.msra.mxu0 0
    %895 = vmatprep.subr.bf16.mxu0 0
    %896 = vmatpush1.bf16.msra.mxu0 0
    %897 = vmatprep.subr.bf16.mxu0 0
    %898 = vmatpush1.bf16.msra.mxu0 0
    %899 = vmatprep.subr.bf16.mxu0 %v488
    %900 = vmatpush1.bf16.msra.mxu0 %v487
    %901 = vmatprep.subr.bf16.mxu0 %v486
    %902 = vmatpush1.bf16.msra.mxu0 %v485
    %903 = vmatprep.subr.bf16.mxu0 %v484
    %904 = vmatpush1.bf16.msra.mxu0 %v483
    %905 = vmatprep.subr.bf16.mxu0 %v482
    %906 = vmatpush1.bf16.msra.mxu0 %v481
    %907 = vmatprep.subr.bf16.mxu0 0
    %908 = vmatpush2.bf16.msra.mxu0 0
    %909 = vmatprep.subr.bf16.mxu0 0
    %910 = vmatpush2.bf16.msra.mxu0 0
    %911 = vmatprep.subr.bf16.mxu0 0
    %912 = vmatpush2.bf16.msra.mxu0 0
    %913 = vmatprep.subr.bf16.mxu0 0
    %914 = vmatpush2.bf16.msra.mxu0 0
    %915 = vmatprep.subr.bf16.mxu0 0
    %916 = vmatpush2.bf16.msra.mxu0 0
    %917 = vmatprep.subr.bf16.mxu0 0
    %918 = vmatpush2.bf16.msra.mxu0 0
    %919 = vmatprep.subr.bf16.mxu0 0
    %920 = vmatpush2.bf16.msra.mxu0 0
    %921 = vmatprep.subr.bf16.mxu0 0
    %922 = vmatpush2.bf16.msra.mxu0 0
    %923 = vmatprep.mubr.bf16.mxu0 0
    %924 = vmatmul.mubr.bf16.gmra.mxu0 %v765
    %v925 = vpop.f32.mrf.mxu0
    %v926 = vadd.f32 %v450, %v925
    %v927 = vpop.f32.mrf.mxu0
    %v928 = vadd.f32 %v454, %v927
    %v929 = vpop.f32.mrf.mxu0
    %v930 = vpop.f32.mrf.mxu0
    %931 = vdwg.mxu0
    %v932 = vadd.f32 %v926, %v885
    %v933 = vadd.f32 %v928, %v887
    %v934 = vxor.u32 %v932, 2147483648
    %v935 = vmul.f32 %v934, 1.442695
    %v936 = vpow.pop %v935
    %v937 = vadd.f32 %v936, 1.0
    %v938 = vrcp.pop %v937
    %v939 = vmul.f32 1.0, %v938
    %v940 = vtanh.pop %v933
    %v941 = vxor.u32 %v933, 2147483648
    %v942 = vmul.f32 %v941, 1.442695
    %v943 = vpow.pop %v942
    %v944 = vadd.f32 %v943, 1.0
    %v945 = vrcp.pop %v944
    %v946 = vmul.f32 1.0, %v945
    %v947 = vmul.f32 %v939, %v756
    %v948 = vmul.f32 %v939, %v940
    %950 = vrot.lane.b32.xlu0 %v948, 64
    %v951 = vpop.permute.xlu0 %950
    %v953 = vadd.f32 %v947, %v951
    %v954 = vtanh.pop %v953
    %v955 = vmul.f32 %v946, %v954
    %v956 = vpack.c.bf16 %v842, %v842
    %v958 = vrot.slane %v956, 3
    %959 = vrot.lane.b32.xlu0 %v958, 64
    %v960 = vpop.permute.xlu0 %959
    %v962 = vsel %vm211, %v960, 0
    %964 = vmatprep.subr.bf16.mxu0 0
    %965 = vmatpush1.bf16.msra.mxu0 0
    %966 = vmatprep.subr.bf16.mxu0 0
    %967 = vmatpush1.bf16.msra.mxu0 0
    %968 = vmatprep.subr.bf16.mxu0 0
    %969 = vmatpush1.bf16.msra.mxu0 0
    %970 = vmatprep.subr.bf16.mxu0 0
    %971 = vmatpush1.bf16.msra.mxu0 0
    %972 = vmatprep.subr.bf16.mxu0 %v202
    %973 = vmatpush1.bf16.msra.mxu0 %v201
    %974 = vmatprep.subr.bf16.mxu0 %v200
    %975 = vmatpush1.bf16.msra.mxu0 %v199
    %976 = vmatprep.subr.bf16.mxu0 %v198
    %977 = vmatpush1.bf16.msra.mxu0 %v197
    %978 = vmatprep.subr.bf16.mxu0 %v196
    %979 = vmatpush1.bf16.msra.mxu0 %v195
    %980 = vmatprep.subr.bf16.mxu0 0
    %981 = vmatpush2.bf16.msra.mxu0 0
    %982 = vmatprep.subr.bf16.mxu0 0
    %983 = vmatpush2.bf16.msra.mxu0 0
    %984 = vmatprep.subr.bf16.mxu0 0
    %985 = vmatpush2.bf16.msra.mxu0 0
    %986 = vmatprep.subr.bf16.mxu0 0
    %987 = vmatpush2.bf16.msra.mxu0 0
    %988 = vmatprep.subr.bf16.mxu0 0
    %989 = vmatpush2.bf16.msra.mxu0 0
    %990 = vmatprep.subr.bf16.mxu0 0
    %991 = vmatpush2.bf16.msra.mxu0 0
    %992 = vmatprep.subr.bf16.mxu0 0
    %993 = vmatpush2.bf16.msra.mxu0 0
    %994 = vmatprep.subr.bf16.mxu0 0
    %995 = vmatpush2.bf16.msra.mxu0 0
    %996 = vmatprep.mubr.bf16.mxu0 0
    %997 = vmatmul.mubr.bf16.gmra.mxu0 %v962
    %v998 = vpop.f32.mrf.mxu0
    %v999 = vadd.f32 0.0, %v998
    %v1000 = vpop.f32.mrf.mxu0
    %v1001 = vadd.f32 0.0, %v1000
    %v1002 = vpop.f32.mrf.mxu0
    %v1003 = vpop.f32.mrf.mxu0
    %1004 = vdwg.mxu0
    %v1005 = vld [vmem:[#allocation2 + $0x10] sm:$0x3]
    %v1006 = vld [vmem:[#allocation2 + $0x18] sm:$0x3]
    %v1007 = vadd.f32 %v1005, %v999
    %v1008 = vadd.f32 %v1006, %v1001
    %v1009 = vxor.u32 %v1007, 2147483648
    %v1010 = vmul.f32 %v1009, 1.442695
    %v1011 = vpow.pop %v1010
    %v1012 = vadd.f32 %v1011, 1.0
    %v1013 = vrcp.pop %v1012
    %v1014 = vmul.f32 1.0, %v1013
    %v1015 = vtanh.pop %v1008
    %v1016 = vxor.u32 %v1008, 2147483648
    %v1017 = vmul.f32 %v1016, 1.442695
    %v1018 = vpow.pop %v1017
    %v1019 = vadd.f32 %v1018, 1.0
    %v1020 = vrcp.pop %v1019
    %v1021 = vmul.f32 1.0, %v1020
    %v1023 = vrot.slane %v840, 6
    %v1025 = vmul.f32 %v1014, %v1023
    %v1026 = vmul.f32 %v1014, %v1015
    %1028 = vrot.lane.b32.xlu0 %v1026, 64
    %v1029 = vpop.permute.xlu0 %1028
    %v1031 = vadd.f32 %v1025, %v1029
    %v1032 = vtanh.pop %v1031
    %v1033 = vmul.f32 %v1021, %v1032
    %v1034 = vpack.c.bf16 %v955, %v955
    %1036 = vrot.lane.b32.xlu0 %v1034, 64
    %v1037 = vpop.permute.xlu0 %1036
    %v1039 = vsel %vm211, %v1037, 0
    %1041 = vmatprep.subr.bf16.mxu0 0
    %1042 = vmatpush1.bf16.msra.mxu0 0
    %1043 = vmatprep.subr.bf16.mxu0 0
    %1044 = vmatpush1.bf16.msra.mxu0 0
    %1045 = vmatprep.subr.bf16.mxu0 0
    %1046 = vmatpush1.bf16.msra.mxu0 0
    %1047 = vmatprep.subr.bf16.mxu0 0
    %1048 = vmatpush1.bf16.msra.mxu0 0
    %1049 = vmatprep.subr.bf16.mxu0 %v396
    %1050 = vmatpush1.bf16.msra.mxu0 %v395
    %1051 = vmatprep.subr.bf16.mxu0 %v394
    %1052 = vmatpush1.bf16.msra.mxu0 %v393
    %1053 = vmatprep.subr.bf16.mxu0 %v392
    %1054 = vmatpush1.bf16.msra.mxu0 %v391
    %1055 = vmatprep.subr.bf16.mxu0 %v390
    %1056 = vmatpush1.bf16.msra.mxu0 %v389
    %1057 = vmatprep.subr.bf16.mxu0 0
    %1058 = vmatpush2.bf16.msra.mxu0 0
    %1059 = vmatprep.subr.bf16.mxu0 0
    %1060 = vmatpush2.bf16.msra.mxu0 0
    %1061 = vmatprep.subr.bf16.mxu0 0
    %1062 = vmatpush2.bf16.msra.mxu0 0
    %1063 = vmatprep.subr.bf16.mxu0 0
    %1064 = vmatpush2.bf16.msra.mxu0 0
    %1065 = vmatprep.subr.bf16.mxu0 0
    %1066 = vmatpush2.bf16.msra.mxu0 0
    %1067 = vmatprep.subr.bf16.mxu0 0
    %1068 = vmatpush2.bf16.msra.mxu0 0
    %1069 = vmatprep.subr.bf16.mxu0 0
    %1070 = vmatpush2.bf16.msra.mxu0 0
    %1071 = vmatprep.subr.bf16.mxu0 0
    %1072 = vmatpush2.bf16.msra.mxu0 0
    %1073 = vmatprep.mubr.bf16.mxu0 0
    %1074 = vmatmul.mubr.bf16.gmra.mxu0 %v1039
    %v1075 = vpop.f32.mrf.mxu0
    %v1076 = vadd.f32 0.0, %v1075
    %v1077 = vpop.f32.mrf.mxu0
    %v1078 = vadd.f32 0.0, %v1077
    %v1079 = vpop.f32.mrf.mxu0
    %v1080 = vpop.f32.mrf.mxu0
    %1081 = vdwg.mxu0
    %1082 = vmatprep.subr.bf16.mxu0 0
    %1083 = vmatpush1.bf16.msra.mxu0 0
    %1084 = vmatprep.subr.bf16.mxu0 0
    %1085 = vmatpush1.bf16.msra.mxu0 0
    %1086 = vmatprep.subr.bf16.mxu0 0
    %1087 = vmatpush1.bf16.msra.mxu0 0
    %1088 = vmatprep.subr.bf16.mxu0 0
    %1089 = vmatpush1.bf16.msra.mxu0 0
    %1090 = vmatprep.subr.bf16.mxu0 %v488
    %1091 = vmatpush1.bf16.msra.mxu0 %v487
    %1092 = vmatprep.subr.bf16.mxu0 %v486
    %1093 = vmatpush1.bf16.msra.mxu0 %v485
    %1094 = vmatprep.subr.bf16.mxu0 %v484
    %1095 = vmatpush1.bf16.msra.mxu0 %v483
    %1096 = vmatprep.subr.bf16.mxu0 %v482
    %1097 = vmatpush1.bf16.msra.mxu0 %v481
    %1098 = vmatprep.subr.bf16.mxu0 0
    %1099 = vmatpush2.bf16.msra.mxu0 0
    %1100 = vmatprep.subr.bf16.mxu0 0
    %1101 = vmatpush2.bf16.msra.mxu0 0
    %1102 = vmatprep.subr.bf16.mxu0 0
    %1103 = vmatpush2.bf16.msra.mxu0 0
    %1104 = vmatprep.subr.bf16.mxu0 0
    %1105 = vmatpush2.bf16.msra.mxu0 0
    %1106 = vmatprep.subr.bf16.mxu0 0
    %1107 = vmatpush2.bf16.msra.mxu0 0
    %1108 = vmatprep.subr.bf16.mxu0 0
    %1109 = vmatpush2.bf16.msra.mxu0 0
    %1110 = vmatprep.subr.bf16.mxu0 0
    %1111 = vmatpush2.bf16.msra.mxu0 0
    %1112 = vmatprep.subr.bf16.mxu0 0
    %1113 = vmatpush2.bf16.msra.mxu0 0
    %1114 = vmatprep.mubr.bf16.mxu0 0
    %1115 = vmatmul.mubr.bf16.gmra.mxu0 %v962
    %v1116 = vpop.f32.mrf.mxu0
    %v1117 = vadd.f32 %v450, %v1116
    %v1118 = vpop.f32.mrf.mxu0
    %v1119 = vadd.f32 %v454, %v1118
    %v1120 = vpop.f32.mrf.mxu0
    %v1121 = vpop.f32.mrf.mxu0
    %1122 = vdwg.mxu0
    %v1123 = vadd.f32 %v1117, %v1076
    %v1124 = vadd.f32 %v1119, %v1078
    %v1125 = vxor.u32 %v1123, 2147483648
    %v1126 = vmul.f32 %v1125, 1.442695
    %v1127 = vpow.pop %v1126
    %v1128 = vadd.f32 %v1127, 1.0
    %v1129 = vrcp.pop %v1128
    %v1130 = vmul.f32 1.0, %v1129
    %v1131 = vtanh.pop %v1124
    %v1132 = vxor.u32 %v1124, 2147483648
    %v1133 = vmul.f32 %v1132, 1.442695
    %v1134 = vpow.pop %v1133
    %v1135 = vadd.f32 %v1134, 1.0
    %v1136 = vrcp.pop %v1135
    %v1137 = vmul.f32 1.0, %v1136
    %v1138 = vmul.f32 %v1130, %v953
    %v1139 = vmul.f32 %v1130, %v1131
    %1141 = vrot.lane.b32.xlu0 %v1139, 64
    %v1142 = vpop.permute.xlu0 %1141
    %v1144 = vadd.f32 %v1138, %v1142
    %v1145 = vtanh.pop %v1144
    %v1146 = vmul.f32 %v1137, %v1145
    %v1147 = vpack.c.bf16 %v1033, %v1033
    %1149 = vrot.lane.b32.xlu0 %v1147, 64
    %v1150 = vpop.permute.xlu0 %1149
    %v1152 = vsel %vm211, %v1150, 0
    %1154 = vmatprep.subr.bf16.mxu0 0
    %1155 = vmatpush1.bf16.msra.mxu0 0
    %1156 = vmatprep.subr.bf16.mxu0 0
    %1157 = vmatpush1.bf16.msra.mxu0 0
    %1158 = vmatprep.subr.bf16.mxu0 0
    %1159 = vmatpush1.bf16.msra.mxu0 0
    %1160 = vmatprep.subr.bf16.mxu0 0
    %1161 = vmatpush1.bf16.msra.mxu0 0
    %1162 = vmatprep.subr.bf16.mxu0 %v202
    %1163 = vmatpush1.bf16.msra.mxu0 %v201
    %1164 = vmatprep.subr.bf16.mxu0 %v200
    %1165 = vmatpush1.bf16.msra.mxu0 %v199
    %1166 = vmatprep.subr.bf16.mxu0 %v198
    %1167 = vmatpush1.bf16.msra.mxu0 %v197
    %1168 = vmatprep.subr.bf16.mxu0 %v196
    %1169 = vmatpush1.bf16.msra.mxu0 %v195
    %1170 = vmatprep.subr.bf16.mxu0 0
    %1171 = vmatpush2.bf16.msra.mxu0 0
    %1172 = vmatprep.subr.bf16.mxu0 0
    %1173 = vmatpush2.bf16.msra.mxu0 0
    %1174 = vmatprep.subr.bf16.mxu0 0
    %1175 = vmatpush2.bf16.msra.mxu0 0
    %1176 = vmatprep.subr.bf16.mxu0 0
    %1177 = vmatpush2.bf16.msra.mxu0 0
    %1178 = vmatprep.subr.bf16.mxu0 0
    %1179 = vmatpush2.bf16.msra.mxu0 0
    %1180 = vmatprep.subr.bf16.mxu0 0
    %1181 = vmatpush2.bf16.msra.mxu0 0
    %1182 = vmatprep.subr.bf16.mxu0 0
    %1183 = vmatpush2.bf16.msra.mxu0 0
    %1184 = vmatprep.subr.bf16.mxu0 0
    %1185 = vmatpush2.bf16.msra.mxu0 0
    %1186 = vmatprep.mubr.bf16.mxu0 0
    %1187 = vmatmul.mubr.bf16.gmra.mxu0 %v1152
    %v1188 = vpop.f32.mrf.mxu0
    %v1189 = vadd.f32 0.0, %v1188
    %v1190 = vpop.f32.mrf.mxu0
    %v1191 = vadd.f32 0.0, %v1190
    %v1192 = vpop.f32.mrf.mxu0
    %v1193 = vpop.f32.mrf.mxu0
    %1194 = vdwg.mxu0
    %v1195 = vld [vmem:[#allocation2 + $0x10] sm:$0xc]
    %v1196 = vld [vmem:[#allocation2 + $0x18] sm:$0xc]
    %v1199 = vrot.slane %v1189, 6
    %v1200 = vrot.slane %v1191, 6
    %v1203 = vadd.f32 %v1195, %v1199
    %v1204 = vadd.f32 %v1196, %v1200
    %v1205 = vxor.u32 %v1203, 2147483648
    %v1206 = vmul.f32 %v1205, 1.442695
    %v1207 = vpow.pop %v1206
    %v1208 = vadd.f32 %v1207, 1.0
    %v1209 = vrcp.pop %v1208
    %v1210 = vmul.f32 1.0, %v1209
    %v1211 = vtanh.pop %v1204
    %v1212 = vxor.u32 %v1204, 2147483648
    %v1213 = vmul.f32 %v1212, 1.442695
    %v1214 = vpow.pop %v1213
    %v1215 = vadd.f32 %v1214, 1.0
    %v1216 = vrcp.pop %v1215
    %v1217 = vmul.f32 1.0, %v1216
    %v1219 = vrot.slane %v1031, 6
    %v1221 = vmul.f32 %v1210, %v1219
    %v1222 = vmul.f32 %v1210, %v1211
    %1224 = vrot.lane.b32.xlu0 %v1222, 64
    %v1225 = vpop.permute.xlu0 %1224
    %v1227 = vadd.f32 %v1221, %v1225
    %v1228 = vtanh.pop %v1227
    %v1229 = vmul.f32 %v1217, %v1228
    %v1230 = vpack.c.bf16 %v1146, %v1146
    %1232 = vrot.lane.b32.xlu0 %v1230, 64
    %v1233 = vpop.permute.xlu0 %1232
    %v1235 = vsel %vm211, %v1233, 0
    %1237 = vmatprep.subr.bf16.mxu0 0
    %1238 = vmatpush1.bf16.msra.mxu0 0
    %1239 = vmatprep.subr.bf16.mxu0 0
    %1240 = vmatpush1.bf16.msra.mxu0 0
    %1241 = vmatprep.subr.bf16.mxu0 0
    %1242 = vmatpush1.bf16.msra.mxu0 0
    %1243 = vmatprep.subr.bf16.mxu0 0
    %1244 = vmatpush1.bf16.msra.mxu0 0
    %1245 = vmatprep.subr.bf16.mxu0 %v396
    %1246 = vmatpush1.bf16.msra.mxu0 %v395
    %1247 = vmatprep.subr.bf16.mxu0 %v394
    %1248 = vmatpush1.bf16.msra.mxu0 %v393
    %1249 = vmatprep.subr.bf16.mxu0 %v392
    %1250 = vmatpush1.bf16.msra.mxu0 %v391
    %1251 = vmatprep.subr.bf16.mxu0 %v390
    %1252 = vmatpush1.bf16.msra.mxu0 %v389
    %1253 = vmatprep.subr.bf16.mxu0 0
    %1254 = vmatpush2.bf16.msra.mxu0 0
    %1255 = vmatprep.subr.bf16.mxu0 0
    %1256 = vmatpush2.bf16.msra.mxu0 0
    %1257 = vmatprep.subr.bf16.mxu0 0
    %1258 = vmatpush2.bf16.msra.mxu0 0
    %1259 = vmatprep.subr.bf16.mxu0 0
    %1260 = vmatpush2.bf16.msra.mxu0 0
    %1261 = vmatprep.subr.bf16.mxu0 0
    %1262 = vmatpush2.bf16.msra.mxu0 0
    %1263 = vmatprep.subr.bf16.mxu0 0
    %1264 = vmatpush2.bf16.msra.mxu0 0
    %1265 = vmatprep.subr.bf16.mxu0 0
    %1266 = vmatpush2.bf16.msra.mxu0 0
    %1267 = vmatprep.subr.bf16.mxu0 0
    %1268 = vmatpush2.bf16.msra.mxu0 0
    %1269 = vmatprep.mubr.bf16.mxu0 0
    %1270 = vmatmul.mubr.bf16.gmra.mxu0 %v1235
    %v1271 = vpop.f32.mrf.mxu0
    %v1272 = vadd.f32 0.0, %v1271
    %v1273 = vpop.f32.mrf.mxu0
    %v1274 = vadd.f32 0.0, %v1273
    %v1275 = vpop.f32.mrf.mxu0
    %v1276 = vpop.f32.mrf.mxu0
    %1277 = vdwg.mxu0
    %1278 = vmatprep.subr.bf16.mxu0 0
    %1279 = vmatpush1.bf16.msra.mxu0 0
    %1280 = vmatprep.subr.bf16.mxu0 0
    %1281 = vmatpush1.bf16.msra.mxu0 0
    %1282 = vmatprep.subr.bf16.mxu0 0
    %1283 = vmatpush1.bf16.msra.mxu0 0
    %1284 = vmatprep.subr.bf16.mxu0 0
    %1285 = vmatpush1.bf16.msra.mxu0 0
    %1286 = vmatprep.subr.bf16.mxu0 %v488
    %1287 = vmatpush1.bf16.msra.mxu0 %v487
    %1288 = vmatprep.subr.bf16.mxu0 %v486
    %1289 = vmatpush1.bf16.msra.mxu0 %v485
    %1290 = vmatprep.subr.bf16.mxu0 %v484
    %1291 = vmatpush1.bf16.msra.mxu0 %v483
    %1292 = vmatprep.subr.bf16.mxu0 %v482
    %1293 = vmatpush1.bf16.msra.mxu0 %v481
    %1294 = vmatprep.subr.bf16.mxu0 0
    %1295 = vmatpush2.bf16.msra.mxu0 0
    %1296 = vmatprep.subr.bf16.mxu0 0
    %1297 = vmatpush2.bf16.msra.mxu0 0
    %1298 = vmatprep.subr.bf16.mxu0 0
    %1299 = vmatpush2.bf16.msra.mxu0 0
    %1300 = vmatprep.subr.bf16.mxu0 0
    %1301 = vmatpush2.bf16.msra.mxu0 0
    %1302 = vmatprep.subr.bf16.mxu0 0
    %1303 = vmatpush2.bf16.msra.mxu0 0
    %1304 = vmatprep.subr.bf16.mxu0 0
    %1305 = vmatpush2.bf16.msra.mxu0 0
    %1306 = vmatprep.subr.bf16.mxu0 0
    %1307 = vmatpush2.bf16.msra.mxu0 0
    %1308 = vmatprep.subr.bf16.mxu0 0
    %1309 = vmatpush2.bf16.msra.mxu0 0
    %1310 = vmatprep.mubr.bf16.mxu0 0
    %1311 = vmatmul.mubr.bf16.gmra.mxu0 %v1152
    %v1312 = vpop.f32.mrf.mxu0
    %v1313 = vadd.f32 %v450, %v1312
    %v1314 = vpop.f32.mrf.mxu0
    %v1315 = vadd.f32 %v454, %v1314
    %v1316 = vpop.f32.mrf.mxu0
    %v1317 = vpop.f32.mrf.mxu0
    %1318 = vdwg.mxu0
    %v1319 = vadd.f32 %v1313, %v1272
    %v1320 = vadd.f32 %v1315, %v1274
    %v1321 = vxor.u32 %v1319, 2147483648
    %v1322 = vmul.f32 %v1321, 1.442695
    %v1323 = vpow.pop %v1322
    %v1324 = vadd.f32 %v1323, 1.0
    %v1325 = vrcp.pop %v1324
    %v1326 = vmul.f32 1.0, %v1325
    %v1327 = vtanh.pop %v1320
    %v1328 = vxor.u32 %v1320, 2147483648
    %v1329 = vmul.f32 %v1328, 1.442695
    %v1330 = vpow.pop %v1329
    %v1331 = vadd.f32 %v1330, 1.0
    %v1332 = vrcp.pop %v1331
    %v1333 = vmul.f32 1.0, %v1332
    %v1334 = vmul.f32 %v1326, %v1144
    %v1335 = vmul.f32 %v1326, %v1327
    %1337 = vrot.lane.b32.xlu0 %v1335, 64
    %v1338 = vpop.permute.xlu0 %1337
    %v1340 = vadd.f32 %v1334, %v1338
    %v1341 = vtanh.pop %v1340
    %v1342 = vmul.f32 %v1333, %v1341
    %v1343 = vpack.c.bf16 %v1229, %v1229
    %v1345 = vrot.slane %v1343, 1
    %1346 = vrot.lane.b32.xlu0 %v1345, 64
    %v1347 = vpop.permute.xlu0 %1346
    %v1349 = vsel %vm211, %v1347, 0
    %1351 = vmatprep.subr.bf16.mxu0 0
    %1352 = vmatpush1.bf16.msra.mxu0 0
    %1353 = vmatprep.subr.bf16.mxu0 0
    %1354 = vmatpush1.bf16.msra.mxu0 0
    %1355 = vmatprep.subr.bf16.mxu0 0
    %1356 = vmatpush1.bf16.msra.mxu0 0
    %1357 = vmatprep.subr.bf16.mxu0 0
    %1358 = vmatpush1.bf16.msra.mxu0 0
    %1359 = vmatprep.subr.bf16.mxu0 %v202
    %1360 = vmatpush1.bf16.msra.mxu0 %v201
    %1361 = vmatprep.subr.bf16.mxu0 %v200
    %1362 = vmatpush1.bf16.msra.mxu0 %v199
    %1363 = vmatprep.subr.bf16.mxu0 %v198
    %1364 = vmatpush1.bf16.msra.mxu0 %v197
    %1365 = vmatprep.subr.bf16.mxu0 %v196
    %1366 = vmatpush1.bf16.msra.mxu0 %v195
    %1367 = vmatprep.subr.bf16.mxu0 0
    %1368 = vmatpush2.bf16.msra.mxu0 0
    %1369 = vmatprep.subr.bf16.mxu0 0
    %1370 = vmatpush2.bf16.msra.mxu0 0
    %1371 = vmatprep.subr.bf16.mxu0 0
    %1372 = vmatpush2.bf16.msra.mxu0 0
    %1373 = vmatprep.subr.bf16.mxu0 0
    %1374 = vmatpush2.bf16.msra.mxu0 0
    %1375 = vmatprep.subr.bf16.mxu0 0
    %1376 = vmatpush2.bf16.msra.mxu0 0
    %1377 = vmatprep.subr.bf16.mxu0 0
    %1378 = vmatpush2.bf16.msra.mxu0 0
    %1379 = vmatprep.subr.bf16.mxu0 0
    %1380 = vmatpush2.bf16.msra.mxu0 0
    %1381 = vmatprep.subr.bf16.mxu0 0
    %1382 = vmatpush2.bf16.msra.mxu0 0
    %1383 = vmatprep.mubr.bf16.mxu0 0
    %1384 = vmatmul.mubr.bf16.gmra.mxu0 %v1349
    %v1385 = vpop.f32.mrf.mxu0
    %v1386 = vadd.f32 0.0, %v1385
    %v1387 = vpop.f32.mrf.mxu0
    %v1388 = vadd.f32 0.0, %v1387
    %v1389 = vpop.f32.mrf.mxu0
    %v1390 = vpop.f32.mrf.mxu0
    %1391 = vdwg.mxu0
    %v1392 = vld [vmem:[#allocation2 + $0x10] sm:$0x30]
    %v1393 = vld [vmem:[#allocation2 + $0x18] sm:$0x30]
    %v1396 = vrot.slane %v1386, 4
    %v1397 = vrot.slane %v1388, 4
    %v1400 = vadd.f32 %v1392, %v1396
    %v1401 = vadd.f32 %v1393, %v1397
    %v1402 = vxor.u32 %v1400, 2147483648
    %v1403 = vmul.f32 %v1402, 1.442695
    %v1404 = vpow.pop %v1403
    %v1405 = vadd.f32 %v1404, 1.0
    %v1406 = vrcp.pop %v1405
    %v1407 = vmul.f32 1.0, %v1406
    %v1408 = vtanh.pop %v1401
    %v1409 = vxor.u32 %v1401, 2147483648
    %v1410 = vmul.f32 %v1409, 1.442695
    %v1411 = vpow.pop %v1410
    %v1412 = vadd.f32 %v1411, 1.0
    %v1413 = vrcp.pop %v1412
    %v1414 = vmul.f32 1.0, %v1413
    %v1416 = vrot.slane %v1227, 6
    %v1418 = vmul.f32 %v1407, %v1416
    %v1419 = vmul.f32 %v1407, %v1408
    %1421 = vrot.lane.b32.xlu0 %v1419, 64
    %v1422 = vpop.permute.xlu0 %1421
    %v1424 = vadd.f32 %v1418, %v1422
    %v1425 = vtanh.pop %v1424
    %v1426 = vmul.f32 %v1414, %v1425
    %v1427 = vpack.c.bf16 %v1342, %v1342
    %1429 = vrot.lane.b32.xlu0 %v1427, 64
    %v1430 = vpop.permute.xlu0 %1429
    %v1432 = vsel %vm211, %v1430, 0
    %1434 = vmatprep.subr.bf16.mxu0 0
    %1435 = vmatpush1.bf16.msra.mxu0 0
    %1436 = vmatprep.subr.bf16.mxu0 0
    %1437 = vmatpush1.bf16.msra.mxu0 0
    %1438 = vmatprep.subr.bf16.mxu0 0
    %1439 = vmatpush1.bf16.msra.mxu0 0
    %1440 = vmatprep.subr.bf16.mxu0 0
    %1441 = vmatpush1.bf16.msra.mxu0 0
    %1442 = vmatprep.subr.bf16.mxu0 %v396
    %1443 = vmatpush1.bf16.msra.mxu0 %v395
    %1444 = vmatprep.subr.bf16.mxu0 %v394
    %1445 = vmatpush1.bf16.msra.mxu0 %v393
    %1446 = vmatprep.subr.bf16.mxu0 %v392
    %1447 = vmatpush1.bf16.msra.mxu0 %v391
    %1448 = vmatprep.subr.bf16.mxu0 %v390
    %1449 = vmatpush1.bf16.msra.mxu0 %v389
    %1450 = vmatprep.subr.bf16.mxu0 0
    %1451 = vmatpush2.bf16.msra.mxu0 0
    %1452 = vmatprep.subr.bf16.mxu0 0
    %1453 = vmatpush2.bf16.msra.mxu0 0
    %1454 = vmatprep.subr.bf16.mxu0 0
    %1455 = vmatpush2.bf16.msra.mxu0 0
    %1456 = vmatprep.subr.bf16.mxu0 0
    %1457 = vmatpush2.bf16.msra.mxu0 0
    %1458 = vmatprep.subr.bf16.mxu0 0
    %1459 = vmatpush2.bf16.msra.mxu0 0
    %1460 = vmatprep.subr.bf16.mxu0 0
    %1461 = vmatpush2.bf16.msra.mxu0 0
    %1462 = vmatprep.subr.bf16.mxu0 0
    %1463 = vmatpush2.bf16.msra.mxu0 0
    %1464 = vmatprep.subr.bf16.mxu0 0
    %1465 = vmatpush2.bf16.msra.mxu0 0
    %1466 = vmatprep.mubr.bf16.mxu0 0
    %1467 = vmatmul.mubr.bf16.gmra.mxu0 %v1432
    %v1468 = vpop.f32.mrf.mxu0
    %v1469 = vadd.f32 0.0, %v1468
    %v1470 = vpop.f32.mrf.mxu0
    %v1471 = vadd.f32 0.0, %v1470
    %v1472 = vpop.f32.mrf.mxu0
    %v1473 = vpop.f32.mrf.mxu0
    %1474 = vdwg.mxu0
    %1475 = vmatprep.subr.bf16.mxu0 0
    %1476 = vmatpush1.bf16.msra.mxu0 0
    %1477 = vmatprep.subr.bf16.mxu0 0
    %1478 = vmatpush1.bf16.msra.mxu0 0
    %1479 = vmatprep.subr.bf16.mxu0 0
    %1480 = vmatpush1.bf16.msra.mxu0 0
    %1481 = vmatprep.subr.bf16.mxu0 0
    %1482 = vmatpush1.bf16.msra.mxu0 0
    %1483 = vmatprep.subr.bf16.mxu0 %v488
    %1484 = vmatpush1.bf16.msra.mxu0 %v487
    %1485 = vmatprep.subr.bf16.mxu0 %v486
    %1486 = vmatpush1.bf16.msra.mxu0 %v485
    %1487 = vmatprep.subr.bf16.mxu0 %v484
    %1488 = vmatpush1.bf16.msra.mxu0 %v483
    %1489 = vmatprep.subr.bf16.mxu0 %v482
    %1490 = vmatpush1.bf16.msra.mxu0 %v481
    %1491 = vmatprep.subr.bf16.mxu0 0
    %1492 = vmatpush2.bf16.msra.mxu0 0
    %1493 = vmatprep.subr.bf16.mxu0 0
    %1494 = vmatpush2.bf16.msra.mxu0 0
    %1495 = vmatprep.subr.bf16.mxu0 0
    %1496 = vmatpush2.bf16.msra.mxu0 0
    %1497 = vmatprep.subr.bf16.mxu0 0
    %1498 = vmatpush2.bf16.msra.mxu0 0
    %1499 = vmatprep.subr.bf16.mxu0 0
    %1500 = vmatpush2.bf16.msra.mxu0 0
    %1501 = vmatprep.subr.bf16.mxu0 0
    %1502 = vmatpush2.bf16.msra.mxu0 0
    %1503 = vmatprep.subr.bf16.mxu0 0
    %1504 = vmatpush2.bf16.msra.mxu0 0
    %1505 = vmatprep.subr.bf16.mxu0 0
    %1506 = vmatpush2.bf16.msra.mxu0 0
    %1507 = vmatprep.mubr.bf16.mxu0 0
    %1508 = vmatmul.mubr.bf16.gmra.mxu0 %v1349
    %v1509 = vpop.f32.mrf.mxu0
    %v1510 = vadd.f32 %v450, %v1509
    %v1511 = vpop.f32.mrf.mxu0
    %v1512 = vadd.f32 %v454, %v1511
    %v1513 = vpop.f32.mrf.mxu0
    %v1514 = vpop.f32.mrf.mxu0
    %1515 = vdwg.mxu0
    %v1516 = vadd.f32 %v1510, %v1469
    %v1517 = vadd.f32 %v1512, %v1471
    %v1518 = vxor.u32 %v1516, 2147483648
    %v1519 = vmul.f32 %v1518, 1.442695
    %v1520 = vpow.pop %v1519
    %v1521 = vadd.f32 %v1520, 1.0
    %v1522 = vrcp.pop %v1521
    %v1523 = vmul.f32 1.0, %v1522
    %v1524 = vtanh.pop %v1517
    %v1525 = vxor.u32 %v1517, 2147483648
    %v1526 = vmul.f32 %v1525, 1.442695
    %v1527 = vpow.pop %v1526
    %v1528 = vadd.f32 %v1527, 1.0
    %v1529 = vrcp.pop %v1528
    %v1530 = vmul.f32 1.0, %v1529
    %v1531 = vmul.f32 %v1523, %v1340
    %v1532 = vmul.f32 %v1523, %v1524
    %1534 = vrot.lane.b32.xlu0 %v1532, 64
    %v1535 = vpop.permute.xlu0 %1534
    %v1537 = vadd.f32 %v1531, %v1535
    %v1538 = vtanh.pop %v1537
    %v1539 = vmul.f32 %v1530, %v1538
    %v1540 = vpack.c.bf16 %v1426, %v1426
    %v1542 = vrot.slane %v1540, 2
    %1543 = vrot.lane.b32.xlu0 %v1542, 64
    %v1544 = vpop.permute.xlu0 %1543
    %v1546 = vsel %vm211, %v1544, 0
    %1548 = vmatprep.subr.bf16.mxu0 0
    %1549 = vmatpush1.bf16.msra.mxu0 0
    %1550 = vmatprep.subr.bf16.mxu0 0
    %1551 = vmatpush1.bf16.msra.mxu0 0
    %1552 = vmatprep.subr.bf16.mxu0 0
    %1553 = vmatpush1.bf16.msra.mxu0 0
    %1554 = vmatprep.subr.bf16.mxu0 0
    %1555 = vmatpush1.bf16.msra.mxu0 0
    %1556 = vmatprep.subr.bf16.mxu0 %v202
    %1557 = vmatpush1.bf16.msra.mxu0 %v201
    %1558 = vmatprep.subr.bf16.mxu0 %v200
    %1559 = vmatpush1.bf16.msra.mxu0 %v199
    %1560 = vmatprep.subr.bf16.mxu0 %v198
    %1561 = vmatpush1.bf16.msra.mxu0 %v197
    %1562 = vmatprep.subr.bf16.mxu0 %v196
    %1563 = vmatpush1.bf16.msra.mxu0 %v195
    %1564 = vmatprep.subr.bf16.mxu0 0
    %1565 = vmatpush2.bf16.msra.mxu0 0
    %1566 = vmatprep.subr.bf16.mxu0 0
    %1567 = vmatpush2.bf16.msra.mxu0 0
    %1568 = vmatprep.subr.bf16.mxu0 0
    %1569 = vmatpush2.bf16.msra.mxu0 0
    %1570 = vmatprep.subr.bf16.mxu0 0
    %1571 = vmatpush2.bf16.msra.mxu0 0
    %1572 = vmatprep.subr.bf16.mxu0 0
    %1573 = vmatpush2.bf16.msra.mxu0 0
    %1574 = vmatprep.subr.bf16.mxu0 0
    %1575 = vmatpush2.bf16.msra.mxu0 0
    %1576 = vmatprep.subr.bf16.mxu0 0
    %1577 = vmatpush2.bf16.msra.mxu0 0
    %1578 = vmatprep.subr.bf16.mxu0 0
    %1579 = vmatpush2.bf16.msra.mxu0 0
    %1580 = vmatprep.mubr.bf16.mxu0 0
    %1581 = vmatmul.mubr.bf16.gmra.mxu0 %v1546
    %v1582 = vpop.f32.mrf.mxu0
    %v1583 = vadd.f32 0.0, %v1582
    %v1584 = vpop.f32.mrf.mxu0
    %v1585 = vadd.f32 0.0, %v1584
    %v1586 = vpop.f32.mrf.mxu0
    %v1587 = vpop.f32.mrf.mxu0
    %1588 = vdwg.mxu0
    %v1589 = vld [vmem:[#allocation2 + $0x10] sm:$0xc0]
    %v1590 = vld [vmem:[#allocation2 + $0x18] sm:$0xc0]
    %v1593 = vrot.slane %v1583, 2
    %v1594 = vrot.slane %v1585, 2
    %v1597 = vadd.f32 %v1589, %v1593
    %v1598 = vadd.f32 %v1590, %v1594
    %v1599 = vxor.u32 %v1597, 2147483648
    %v1600 = vmul.f32 %v1599, 1.442695
    %v1601 = vpow.pop %v1600
    %v1602 = vadd.f32 %v1601, 1.0
    %v1603 = vrcp.pop %v1602
    %v1604 = vmul.f32 1.0, %v1603
    %v1605 = vtanh.pop %v1598
    %v1606 = vxor.u32 %v1598, 2147483648
    %v1607 = vmul.f32 %v1606, 1.442695
    %v1608 = vpow.pop %v1607
    %v1609 = vadd.f32 %v1608, 1.0
    %v1610 = vrcp.pop %v1609
    %v1611 = vmul.f32 1.0, %v1610
    %v1613 = vrot.slane %v1424, 6
    %v1615 = vmul.f32 %v1604, %v1613
    %v1616 = vmul.f32 %v1604, %v1605
    %1618 = vrot.lane.b32.xlu0 %v1616, 64
    %v1619 = vpop.permute.xlu0 %1618
    %v1621 = vadd.f32 %v1615, %v1619
    %v1622 = vtanh.pop %v1621
    %v1623 = vmul.f32 %v1611, %v1622
    %v1624 = vpack.c.bf16 %v1539, %v1539
    %1626 = vrot.lane.b32.xlu0 %v1624, 64
    %v1627 = vpop.permute.xlu0 %1626
    %v1629 = vsel %vm211, %v1627, 0
    %1631 = vmatprep.subr.bf16.mxu0 0
    %1632 = vmatpush1.bf16.msra.mxu0 0
    %1633 = vmatprep.subr.bf16.mxu0 0
    %1634 = vmatpush1.bf16.msra.mxu0 0
    %1635 = vmatprep.subr.bf16.mxu0 0
    %1636 = vmatpush1.bf16.msra.mxu0 0
    %1637 = vmatprep.subr.bf16.mxu0 0
    %1638 = vmatpush1.bf16.msra.mxu0 0
    %1639 = vmatprep.subr.bf16.mxu0 %v396
    %1640 = vmatpush1.bf16.msra.mxu0 %v395
    %1641 = vmatprep.subr.bf16.mxu0 %v394
    %1642 = vmatpush1.bf16.msra.mxu0 %v393
    %1643 = vmatprep.subr.bf16.mxu0 %v392
    %1644 = vmatpush1.bf16.msra.mxu0 %v391
    %1645 = vmatprep.subr.bf16.mxu0 %v390
    %1646 = vmatpush1.bf16.msra.mxu0 %v389
    %1647 = vmatprep.subr.bf16.mxu0 0
    %1648 = vmatpush2.bf16.msra.mxu0 0
    %1649 = vmatprep.subr.bf16.mxu0 0
    %1650 = vmatpush2.bf16.msra.mxu0 0
    %1651 = vmatprep.subr.bf16.mxu0 0
    %1652 = vmatpush2.bf16.msra.mxu0 0
    %1653 = vmatprep.subr.bf16.mxu0 0
    %1654 = vmatpush2.bf16.msra.mxu0 0
    %1655 = vmatprep.subr.bf16.mxu0 0
    %1656 = vmatpush2.bf16.msra.mxu0 0
    %1657 = vmatprep.subr.bf16.mxu0 0
    %1658 = vmatpush2.bf16.msra.mxu0 0
    %1659 = vmatprep.subr.bf16.mxu0 0
    %1660 = vmatpush2.bf16.msra.mxu0 0
    %1661 = vmatprep.subr.bf16.mxu0 0
    %1662 = vmatpush2.bf16.msra.mxu0 0
    %1663 = vmatprep.mubr.bf16.mxu0 0
    %1664 = vmatmul.mubr.bf16.gmra.mxu0 %v1629
    %v1665 = vpop.f32.mrf.mxu0
    %v1666 = vadd.f32 0.0, %v1665
    %v1667 = vpop.f32.mrf.mxu0
    %v1668 = vadd.f32 0.0, %v1667
    %v1669 = vpop.f32.mrf.mxu0
    %v1670 = vpop.f32.mrf.mxu0
    %1671 = vdwg.mxu0
    %1672 = vmatprep.subr.bf16.mxu0 0
    %1673 = vmatpush1.bf16.msra.mxu0 0
    %1674 = vmatprep.subr.bf16.mxu0 0
    %1675 = vmatpush1.bf16.msra.mxu0 0
    %1676 = vmatprep.subr.bf16.mxu0 0
    %1677 = vmatpush1.bf16.msra.mxu0 0
    %1678 = vmatprep.subr.bf16.mxu0 0
    %1679 = vmatpush1.bf16.msra.mxu0 0
    %1680 = vmatprep.subr.bf16.mxu0 %v488
    %1681 = vmatpush1.bf16.msra.mxu0 %v487
    %1682 = vmatprep.subr.bf16.mxu0 %v486
    %1683 = vmatpush1.bf16.msra.mxu0 %v485
    %1684 = vmatprep.subr.bf16.mxu0 %v484
    %1685 = vmatpush1.bf16.msra.mxu0 %v483
    %1686 = vmatprep.subr.bf16.mxu0 %v482
    %1687 = vmatpush1.bf16.msra.mxu0 %v481
    %1688 = vmatprep.subr.bf16.mxu0 0
    %1689 = vmatpush2.bf16.msra.mxu0 0
    %1690 = vmatprep.subr.bf16.mxu0 0
    %1691 = vmatpush2.bf16.msra.mxu0 0
    %1692 = vmatprep.subr.bf16.mxu0 0
    %1693 = vmatpush2.bf16.msra.mxu0 0
    %1694 = vmatprep.subr.bf16.mxu0 0
    %1695 = vmatpush2.bf16.msra.mxu0 0
    %1696 = vmatprep.subr.bf16.mxu0 0
    %1697 = vmatpush2.bf16.msra.mxu0 0
    %1698 = vmatprep.subr.bf16.mxu0 0
    %1699 = vmatpush2.bf16.msra.mxu0 0
    %1700 = vmatprep.subr.bf16.mxu0 0
    %1701 = vmatpush2.bf16.msra.mxu0 0
    %1702 = vmatprep.subr.bf16.mxu0 0
    %1703 = vmatpush2.bf16.msra.mxu0 0
    %1704 = vmatprep.mubr.bf16.mxu0 0
    %1705 = vmatmul.mubr.bf16.gmra.mxu0 %v1546
    %v1706 = vpop.f32.mrf.mxu0
    %v1707 = vadd.f32 %v450, %v1706
    %v1708 = vpop.f32.mrf.mxu0
    %v1709 = vadd.f32 %v454, %v1708
    %v1710 = vpop.f32.mrf.mxu0
    %v1711 = vpop.f32.mrf.mxu0
    %1712 = vdwg.mxu0
    %v1713 = vadd.f32 %v1707, %v1666
    %v1714 = vadd.f32 %v1709, %v1668
    %v1715 = vxor.u32 %v1713, 2147483648
    %v1716 = vmul.f32 %v1715, 1.442695
    %v1717 = vpow.pop %v1716
    %v1718 = vadd.f32 %v1717, 1.0
    %v1719 = vrcp.pop %v1718
    %v1720 = vmul.f32 1.0, %v1719
    %v1721 = vtanh.pop %v1714
    %v1722 = vxor.u32 %v1714, 2147483648
    %v1723 = vmul.f32 %v1722, 1.442695
    %v1724 = vpow.pop %v1723
    %v1725 = vadd.f32 %v1724, 1.0
    %v1726 = vrcp.pop %v1725
    %v1727 = vmul.f32 1.0, %v1726
    %v1728 = vmul.f32 %v1720, %v1537
    %v1729 = vmul.f32 %v1720, %v1721
    %1731 = vrot.lane.b32.xlu0 %v1729, 64
    %v1732 = vpop.permute.xlu0 %1731
    %v1734 = vadd.f32 %v1728, %v1732
    %v1735 = vtanh.pop %v1734
    %v1736 = vmul.f32 %v1727, %v1735
    %v1737 = vpack.c.bf16 %v1736, %v1736
    %1739 = vrot.lane.b32.xlu0 %v1737, 64
    %v1740 = vpop.permute.xlu0 %1739
    %v1742 = vsel %vm211, %v1740, 0
    %1744 = vmatprep.subr.bf16.mxu0 0
    %1745 = vmatpush1.bf16.msra.mxu0 0
    %1746 = vmatprep.subr.bf16.mxu0 0
    %1747 = vmatpush1.bf16.msra.mxu0 0
    %1748 = vmatprep.subr.bf16.mxu0 0
    %1749 = vmatpush1.bf16.msra.mxu0 0
    %1750 = vmatprep.subr.bf16.mxu0 0
    %1751 = vmatpush1.bf16.msra.mxu0 0
    %1752 = vmatprep.subr.bf16.mxu0 %v396
    %1753 = vmatpush1.bf16.msra.mxu0 %v395
    %1754 = vmatprep.subr.bf16.mxu0 %v394
    %1755 = vmatpush1.bf16.msra.mxu0 %v393
    %1756 = vmatprep.subr.bf16.mxu0 %v392
    %1757 = vmatpush1.bf16.msra.mxu0 %v391
    %1758 = vmatprep.subr.bf16.mxu0 %v390
    %1759 = vmatpush1.bf16.msra.mxu0 %v389
    %1760 = vmatprep.subr.bf16.mxu0 0
    %1761 = vmatpush2.bf16.msra.mxu0 0
    %1762 = vmatprep.subr.bf16.mxu0 0
    %1763 = vmatpush2.bf16.msra.mxu0 0
    %1764 = vmatprep.subr.bf16.mxu0 0
    %1765 = vmatpush2.bf16.msra.mxu0 0
    %1766 = vmatprep.subr.bf16.mxu0 0
    %1767 = vmatpush2.bf16.msra.mxu0 0
    %1768 = vmatprep.subr.bf16.mxu0 0
    %1769 = vmatpush2.bf16.msra.mxu0 0
    %1770 = vmatprep.subr.bf16.mxu0 0
    %1771 = vmatpush2.bf16.msra.mxu0 0
    %1772 = vmatprep.subr.bf16.mxu0 0
    %1773 = vmatpush2.bf16.msra.mxu0 0
    %1774 = vmatprep.subr.bf16.mxu0 0
    %1775 = vmatpush2.bf16.msra.mxu0 0
    %1776 = vmatprep.mubr.bf16.mxu0 0
    %1777 = vmatmul.mubr.bf16.gmra.mxu0 %v1742
    %v1778 = vpop.f32.mrf.mxu0
    %v1779 = vadd.f32 0.0, %v1778
    %v1780 = vpop.f32.mrf.mxu0
    %v1781 = vadd.f32 0.0, %v1780
    %v1782 = vpop.f32.mrf.mxu0
    %v1783 = vpop.f32.mrf.mxu0
    %1784 = vdwg.mxu0
    %v1785 = vpack.c.bf16 %v1623, %v1623
    %v1787 = vrot.slane %v1785, 3
    %1788 = vrot.lane.b32.xlu0 %v1787, 64
    %v1789 = vpop.permute.xlu0 %1788
    %v1791 = vsel %vm211, %v1789, 0
    %1793 = vmatprep.subr.bf16.mxu0 0
    %1794 = vmatpush1.bf16.msra.mxu0 0
    %1795 = vmatprep.subr.bf16.mxu0 0
    %1796 = vmatpush1.bf16.msra.mxu0 0
    %1797 = vmatprep.subr.bf16.mxu0 0
    %1798 = vmatpush1.bf16.msra.mxu0 0
    %1799 = vmatprep.subr.bf16.mxu0 0
    %1800 = vmatpush1.bf16.msra.mxu0 0
    %1801 = vmatprep.subr.bf16.mxu0 %v488
    %1802 = vmatpush1.bf16.msra.mxu0 %v487
    %1803 = vmatprep.subr.bf16.mxu0 %v486
    %1804 = vmatpush1.bf16.msra.mxu0 %v485
    %1805 = vmatprep.subr.bf16.mxu0 %v484
    %1806 = vmatpush1.bf16.msra.mxu0 %v483
    %1807 = vmatprep.subr.bf16.mxu0 %v482
    %1808 = vmatpush1.bf16.msra.mxu0 %v481
    %1809 = vmatprep.subr.bf16.mxu0 0
    %1810 = vmatpush2.bf16.msra.mxu0 0
    %1811 = vmatprep.subr.bf16.mxu0 0
    %1812 = vmatpush2.bf16.msra.mxu0 0
    %1813 = vmatprep.subr.bf16.mxu0 0
    %1814 = vmatpush2.bf16.msra.mxu0 0
    %1815 = vmatprep.subr.bf16.mxu0 0
    %1816 = vmatpush2.bf16.msra.mxu0 0
    %1817 = vmatprep.subr.bf16.mxu0 0
    %1818 = vmatpush2.bf16.msra.mxu0 0
    %1819 = vmatprep.subr.bf16.mxu0 0
    %1820 = vmatpush2.bf16.msra.mxu0 0
    %1821 = vmatprep.subr.bf16.mxu0 0
    %1822 = vmatpush2.bf16.msra.mxu0 0
    %1823 = vmatprep.subr.bf16.mxu0 0
    %1824 = vmatpush2.bf16.msra.mxu0 0
    %1825 = vmatprep.mubr.bf16.mxu0 0
    %1826 = vmatmul.mubr.bf16.gmra.mxu0 %v1791
    %v1827 = vpop.f32.mrf.mxu0
    %v1828 = vadd.f32 %v450, %v1827
    %v1829 = vpop.f32.mrf.mxu0
    %v1830 = vadd.f32 %v454, %v1829
    %v1831 = vpop.f32.mrf.mxu0
    %v1832 = vpop.f32.mrf.mxu0
    %1833 = vdwg.mxu0
    %v1834 = vadd.f32 %v1828, %v1779
    %v1835 = vadd.f32 %v1830, %v1781
    %v1836 = vxor.u32 %v1834, 2147483648
    %v1837 = vmul.f32 %v1836, 1.442695
    %v1838 = vpow.pop %v1837
    %v1839 = vadd.f32 %v1838, 1.0
    %v1840 = vrcp.pop %v1839
    %v1841 = vmul.f32 1.0, %v1840
    %v1842 = vtanh.pop %v1835
    %v1843 = vxor.u32 %v1835, 2147483648
    %v1844 = vmul.f32 %v1843, 1.442695
    %v1845 = vpow.pop %v1844
    %v1846 = vadd.f32 %v1845, 1.0
    %v1847 = vrcp.pop %v1846
    %v1848 = vmul.f32 1.0, %v1847
    %v1849 = vmul.f32 %v1841, %v1734
    %v1850 = vmul.f32 %v1841, %v1842
    %1852 = vrot.lane.b32.xlu0 %v1850, 64
    %v1853 = vpop.permute.xlu0 %1852
    %v1855 = vadd.f32 %v1849, %v1853
    %v1856 = vtanh.pop %v1855
    %v1857 = vmul.f32 %v1848, %v1856
    %v1858 = vld [vmem:[%s7] sm:$0xff]
    %v1859 = vld [vmem:[%s7 + $0x8] sm:$0xff]
    %v1860 = vld [vmem:[%s7 + $0x10] sm:$0xff]
    %v1861 = vld [vmem:[%s7 + $0x18] sm:$0xff]
    %v1862 = vld [vmem:[%s7 + $0x20] sm:$0xff]
    %v1863 = vld [vmem:[%s7 + $0x28] sm:$0xff]
    %v1864 = vld [vmem:[%s7 + $0x30] sm:$0xff]
    %v1865 = vld [vmem:[%s7 + $0x38] sm:$0xff]
    %v1866 = vld [vmem:[#allocation3] sm:$0x1]
    %v1868 = vlaneseq
    %v1869 = vshrl.u32 %v1868, 7
    %v1870 = vsub.s32 0, %v1869
    %v1871 = vrot.slane %v1866, %v1870
    %1874 = vrot.lane.b32.xlu0 %v1857, 64
    %v1875 = vpop.permute.xlu0 %1874
    %v1876 = vsel %vm211, %v1875, 0
    %1878 = vmatprep.subr.mxu0 0.0
    %1879 = vmatpush1.msra.mxu0 0.0
    %1880 = vmatprep.subr.mxu0 0.0
    %1881 = vmatpush1.msra.mxu0 0.0
    %1882 = vmatprep.subr.mxu0 0.0
    %1883 = vmatpush1.msra.mxu0 0.0
    %1884 = vmatprep.subr.mxu0 0.0
    %1885 = vmatpush1.msra.mxu0 0.0
    %1886 = vmatprep.subr.mxu0 0.0
    %1887 = vmatpush1.msra.mxu0 0.0
    %1888 = vmatprep.subr.mxu0 0.0
    %1889 = vmatpush1.msra.mxu0 0.0
    %1890 = vmatprep.subr.mxu0 0.0
    %1891 = vmatpush1.msra.mxu0 0.0
    %1892 = vmatprep.subr.mxu0 0.0
    %1893 = vmatpush1.msra.mxu0 0.0
    %1894 = vmatprep.subr.mxu0 0.0
    %1895 = vmatpush1.msra.mxu0 %v1865
    %1896 = vmatprep.subr.mxu0 0.0
    %1897 = vmatpush1.msra.mxu0 %v1864
    %1898 = vmatprep.subr.mxu0 0.0
    %1899 = vmatpush1.msra.mxu0 %v1863
    %1900 = vmatprep.subr.mxu0 0.0
    %1901 = vmatpush1.msra.mxu0 %v1862
    %1902 = vmatprep.subr.mxu0 0.0
    %1903 = vmatpush1.msra.mxu0 %v1861
    %1904 = vmatprep.subr.mxu0 0.0
    %1905 = vmatpush1.msra.mxu0 %v1860
    %1906 = vmatprep.subr.mxu0 0.0
    %1907 = vmatpush1.msra.mxu0 %v1859
    %1908 = vmatprep.subr.mxu0 0.0
    %1909 = vmatpush1.msra.mxu0 %v1858
    %1910 = vmatprep.subr.mxu0 0.0
    %1911 = vmatpush2.msra.mxu0 0.0
    %1912 = vmatprep.subr.mxu0 0.0
    %1913 = vmatpush2.msra.mxu0 0.0
    %1914 = vmatprep.subr.mxu0 0.0
    %1915 = vmatpush2.msra.mxu0 0.0
    %1916 = vmatprep.subr.mxu0 0.0
    %1917 = vmatpush2.msra.mxu0 0.0
    %1918 = vmatprep.subr.mxu0 0.0
    %1919 = vmatpush2.msra.mxu0 0.0
    %1920 = vmatprep.subr.mxu0 0.0
    %1921 = vmatpush2.msra.mxu0 0.0
    %1922 = vmatprep.subr.mxu0 0.0
    %1923 = vmatpush2.msra.mxu0 0.0
    %1924 = vmatprep.subr.mxu0 0.0
    %1925 = vmatpush2.msra.mxu0 0.0
    %1926 = vmatprep.subr.mxu0 0.0
    %1927 = vmatpush2.msra.mxu0 0.0
    %1928 = vmatprep.subr.mxu0 0.0
    %1929 = vmatpush2.msra.mxu0 0.0
    %1930 = vmatprep.subr.mxu0 0.0
    %1931 = vmatpush2.msra.mxu0 0.0
    %1932 = vmatprep.subr.mxu0 0.0
    %1933 = vmatpush2.msra.mxu0 0.0
    %1934 = vmatprep.subr.mxu0 0.0
    %1935 = vmatpush2.msra.mxu0 0.0
    %1936 = vmatprep.subr.mxu0 0.0
    %1937 = vmatpush2.msra.mxu0 0.0
    %1938 = vmatprep.subr.mxu0 0.0
    %1939 = vmatpush2.msra.mxu0 0.0
    %1940 = vmatprep.subr.mxu0 0.0
    %1941 = vmatpush2.msra.mxu0 0.0
    %1942 = vmatprep.mubr.f32.mxu0 0.0
    %1943 = vmatmul.mubr.f32.gmra.mxu0 %v1876
    %v1944 = vpop.f32.mrf.mxu0
    %v1945 = vadd.f32 %v1871, %v1944
    %v1946 = vpop.f32.mrf.mxu0
    %1947 = vdwg.mxu0
    %vm1948 = vcmask 1024
    %1949 = vst.msk [vmem:[%s9] sm:$0x3] %vm1948, %v1945
    // Predicated region
    $region46: #{tpu_custom_call.1} parent=1 // pred_check
      _
    $region47: #{tpu_custom_call.1} parent=1 // pred_check_branch
      %1951 = sbr.rel (0) target = $region49
    $region48: #{tpu_custom_call.1} parent=1 // pred_region
      _
    $region49: #{tpu_custom_call.1} parent=1 // pred_fallthru
      _
    // Predicated region
    $region50: #{tpu_custom_call.1} parent=1 // pred_check
      _
    $region51: #{tpu_custom_call.1} parent=1 // pred_check_branch
      %1953 = sbr.rel (0) target = $region53
    $region52: #{tpu_custom_call.1} parent=1 // pred_region
      _
    $region53: #{tpu_custom_call.1} parent=1 // pred_fallthru
      _
    %1954 = vsyncpa [#allocation5], 1
    %1955 = vsyncpa [#allocation7], 1

</llo_original>
